<compile_context>
chip_gen: v6e
topology: v6e:2x2x1
jax: 0.10.0
libtpu: 0.0.40
codegen_flags: <defaults>
</compile_context>

<pallas_src>
import functools

import jax
import jax.numpy as jnp
from jax import lax
from jax.experimental import pallas as pl
from jax.experimental.pallas import tpu as pltpu


def _haar_kernel(x_ref, cs_ref, cd_ref, o_ref, *,
                 wavelet_major, flatten_out, w, k, fac):
    # x_ref : (bc, th, 2*W)   lanes [0,W) = row 2i, lanes [W,2W) = row 2i+1
    # cs_ref: (K, K//2)       column-pair sum matrix   (+1 / +1), chunk size K
    # cd_ref: (K, K//2)       column-pair diff matrix  (+1 / -1)
    # o_ref : (bc, 4, th*Wh) | (1, 4, bc, th*Wh)        flattened (lane-dense)
    #         (bc, 4, th, Wh) | (1, 4, bc, th, Wh)      when Wh % 128 == 0
    bc, th, _ = x_ref.shape
    wh = w // 2
    wc = w // k                       # number of static width chunks

    # Row butterfly: rows 2i / 2i+1 are the two lane halves of the 2W view
    # (whole lane slices, no strided sublane reads).
    top = x_ref[:, :, :w]
    bot = x_ref[:, :, w:]
    rs = (top + bot).reshape(bc * th, w)      # per-column row sums   (a+c, b+d)
    rd = (top - bot).reshape(bc * th, w)      # per-column row diffs  (a-c, b-d)

    cs = cs_ref[...]
    cd = cd_ref[...]

    def col_butterfly(lhs):
        # Sums / diffs of adjacent column pairs on the MXU, chunked so MXU work
        # per output element is O(K) and the constant stays tiny for any W.
        if wc == 1:
            return (jnp.dot(lhs, cs, preferred_element_type=jnp.float32),
                    jnp.dot(lhs, cd, preferred_element_type=jnp.float32))
        s_parts, d_parts = [], []
        for c in range(wc):
            chunk = lhs[:, c * k:(c + 1) * k]         # aligned static lane slice
            s_parts.append(jnp.dot(chunk, cs, preferred_element_type=jnp.float32))
            d_parts.append(jnp.dot(chunk, cd, preferred_element_type=jnp.float32))
        return (jnp.concatenate(s_parts, axis=1),
                jnp.concatenate(d_parts, axis=1))

    # With patch [[a, b], [c, d]]:
    out0, out1 = col_butterfly(rs)    # a+b+c+d , a-b+c-d
    out2, out3 = col_butterfly(rd)    # a+b-c-d , a-b-c+d

    for idx, val in enumerate((out0, out1, out2, out3)):
        if fac is not None:           # bf16 path: fac applied as f32 epilogue
            val = val * fac
        if flatten_out:
            val3 = val.reshape(bc, th, wh)            # leading-dim split (cheap)
            # sublane->lane relayout expressed as an explicit lane concat
            # (guaranteed lowering; th is capped <= 64 by the tile picker).
            v = jnp.concatenate([val3[:, t, :] for t in range(th)], axis=-1)
        else:
            v = val.reshape(bc, th, wh)
        v = v.astype(o_ref.dtype)
        if wavelet_major:
            o_ref[0, idx] = v
        else:
            o_ref[:, idx] = v


def _divisors(n):
    return [d for d in range(1, n + 1) if n % d == 0]


def _pick_tiles(nc_total, chan_base, C, Hh, W, itemsize, wavelet_major,
                th_opts, target_bytes, vmem_budget, const_bytes):
    """Pick (bc, th): channels / output rows per block.

    Fits double-buffered in+out blocks plus in-kernel f32 temporaries inside
    the VMEM budget, keeps the grid >= 8 even steps when possible (megacore /
    pipeline overlap), and targets ~target_bytes of HBM traffic per step.
    """
    bc_opts = [b for b in _divisors(chan_base)
               if (not wavelet_major) or b % 8 == 0 or b == C]
    if not bc_opts:
        bc_opts = [chan_base]

    total_moved = 4 * nc_total * Hh * W * itemsize     # whole problem, in + out
    min_moved = min(1 << 20, total_moved)              # don't shrink below ~1 MiB

    best = best_key = best_est = None
    fallback = fallback_est = None
    for th in th_opts:
        for bc in bc_opts:
            in_b = bc * 2 * th * W * itemsize          # input block bytes
            out_b = in_b                               # volume preserving
            moved = in_b + out_b
            # in-kernel temporaries: top/bot/rs/rd (input dtype) + f32 matmul
            # outputs + the relayouted / cast store values.
            tmp_b = 4 * bc * th * W * itemsize + 3 * bc * th * W * 4
            est = 2 * (in_b + out_b) + tmp_b + const_bytes
            steps = (nc_total // bc) * (Hh // th)
            if fallback_est is None or est < fallback_est:
                fallback, fallback_est = (bc, th), est
            if est > vmem_budget:
                continue
            key = (min(steps, 8) if moved >= min_moved else 0,   # long-enough grid
                   1 if steps % 2 == 0 else 0,                   # megacore-friendly
                   moved if moved <= target_bytes else 2 * target_bytes - moved)
            if best_key is None or key > best_key:
                best, best_key, best_est = (bc, th), key, est
    if best is None:
        # Pathological shapes (e.g. huge odd H/2): smallest legal footprint.
        # TODO(synk): chunk the width through the grid for such shapes.
        best, best_est = fallback, fallback_est
    return best[0], best[1], best_est


def haar_downsampling_fwd(x, *, rebalance=1.0, order_by_wavelet=False,
                          block_bytes=None):
    """Forward HaarDownsampling (rev=False): (N, C, H, W) -> (N, 4C, H/2, W/2)."""
    N, C, H, W = x.shape
    assert H % 2 == 0 and W % 2 == 0, "Uneven input dimensions"
    Hh, Wh = H // 2, W // 2
    fac_fwd = 0.5 * float(rebalance)
    dtype = x.dtype
    itemsize = dtype.itemsize

    # Generation-aware budgets (v5e/v6e: 128 MiB VMEM, v7x: 64 MiB).
    try:
        vmem_cap = int(pltpu.get_tpu_info().vmem_capacity_bytes)
    except Exception:
        vmem_cap = 64 * 1024 * 1024            # size for the smallest (v7x)
    if block_bytes is None:
        block_bytes = (8 if vmem_cap >= 96 * 1024 * 1024 else 6) * 1024 * 1024
    vmem_budget = int(0.6 * vmem_cap)

    # Column-butterfly chunk size: MXU work per output element is O(K).
    if W % 256 == 0:
        K = 256
    elif W % 128 == 0:
        K = 128
    else:
        K = W
    Kh = K // 2

    # +-1 column-pair selection matrices (chunk-local):
    #   cs[2j, j] = cs[2j+1, j] = 1 ;  cd[2j, j] = 1, cd[2j+1, j] = -1
    rows = jnp.arange(K, dtype=jnp.int32)[:, None]
    cols = jnp.arange(Kh, dtype=jnp.int32)[None, :]
    even = (rows == 2 * cols).astype(jnp.float32)
    odd = (rows == 2 * cols + 1).astype(jnp.float32)
    if dtype == jnp.float32:
        cs = (even + odd) * fac_fwd            # fold fac exactly into f32 consts
        cd = (even - odd) * fac_fwd
        fac_epilogue = None
    else:
        cs = (even + odd).astype(dtype)        # +-1 exact in bf16 etc.
        cd = (even - odd).astype(dtype)
        fac_epilogue = fac_fwd                 # single f32 epilogue multiply
    const_bytes = 2 * 2 * K * Kh * cs.dtype.itemsize   # 2 matrices, 2 buffers

    # Row-tile options (TPU (8,128) block rules) and lane-dense output choice.
    th_opts = [t for t in _divisors(Hh) if t % 8 == 0 or t == Hh]
    flatten_out = (Wh % 128 != 0)
    if flatten_out:
        # flattened out-block last dim is th*Wh -> needs %128 (or th == Hh);
        # cap th so the in-kernel sublane->lane relayout stays a small concat.
        f_opts = [t for t in th_opts
                  if ((t * Wh) % 128 == 0 or t == Hh) and t <= 64]
        if f_opts:
            th_opts = f_opts
        else:
            flatten_out = False                # keep 4-D layout for odd shapes

    chan_base = C if order_by_wavelet else N * C
    bc, th, vmem_est = _pick_tiles(N * C, chan_base, C, Hh, W, itemsize,
                                   order_by_wavelet, th_opts,
                                   block_bytes, vmem_budget, const_bytes)
    grid = ((N * C) // bc, Hh // th)

    # Free metadata-only view: one row = the row pair (2i, 2i+1).
    x3 = x.reshape(N * C, Hh, 2 * W)

    in_specs = [
        pl.BlockSpec((bc, th, 2 * W), lambda i, j: (i, j, 0)),
        pl.BlockSpec((K, Kh), lambda i, j: (0, 0)),
        pl.BlockSpec((K, Kh), lambda i, j: (0, 0)),
    ]

    if order_by_wavelet:
        # Emit directly in wavelet-major layout: the channel permutation is a
        # free reshape in the wrapper instead of a gather pass over the output.
        ncb = C // bc
        if flatten_out:
            out_shape = jax.ShapeDtypeStruct((N, 4, C, Hh * Wh), dtype)
            out_spec = pl.BlockSpec(
                (1, 4, bc, th * Wh),
                lambda i, j, _n=ncb: (i // _n, 0, i % _n, j))
        else:
            out_shape = jax.ShapeDtypeStruct((N, 4, C, Hh, Wh), dtype)
            out_spec = pl.BlockSpec(
                (1, 4, bc, th, Wh),
                lambda i, j, _n=ncb: (i // _n, 0, i % _n, j, 0))
    else:
        if flatten_out:
            out_shape = jax.ShapeDtypeStruct((N * C, 4, Hh * Wh), dtype)
            out_spec = pl.BlockSpec((bc, 4, th * Wh), lambda i, j: (i, 0, j))
        else:
            out_shape = jax.ShapeDtypeStruct((N * C, 4, Hh, Wh), dtype)
            out_spec = pl.BlockSpec((bc, 4, th, Wh), lambda i, j: (i, 0, j, 0))

    vmem_limit = int(min(0.9 * vmem_cap,
                         max(32 * 1024 * 1024, int(1.5 * vmem_est))))

    out = pl.pallas_call(
        functools.partial(_haar_kernel, wavelet_major=order_by_wavelet,
                          flatten_out=flatten_out, w=W, k=K, fac=fac_epilogue),
        out_shape=out_shape,
        grid=grid,
        in_specs=in_specs,
        out_specs=out_spec,
        compiler_params=pltpu.CompilerParams(
            dimension_semantics=("parallel", "parallel"),
            vmem_limit_bytes=vmem_limit),
    )(x3, cs, cd)

    return out.reshape(N, 4 * C, Hh, Wh)


def _haar_reference(x, *, rebalance=1.0, order_by_wavelet=False):
    """Pure-JAX reference: grouped conv2d, mirroring the PyTorch module."""
    N, C, H, W = x.shape
    w = jnp.ones((4, 1, 2, 2), dtype=x.dtype)
    w = w.at[1, 0, 0, 1].set(-1).at[1, 0, 1, 1].set(-1)
    w = w.at[2, 0, 1, 0].set(-1).at[2, 0, 1, 1].set(-1)
    w = w.at[3, 0, 1, 0].set(-1).at[3, 0, 0, 1].set(-1)
    w = jnp.concatenate([w] * C, axis=0)               # (4*C, 1, 2, 2)
    out = lax.conv_general_dilated(
        x, w, window_strides=(2, 2), padding="VALID",
        dimension_numbers=("NCHW", "OIHW", "NCHW"),
        feature_group_count=C)
    fac_fwd = 0.5 * rebalance
    if order_by_wavelet:
        perm = jnp.array([i + 4 * j for i in range(4) for j in range(C)],
                         dtype=jnp.int32)
        return out[:, perm] * fac_fwd
    return out * fac_fwd


if __name__ == "__main__":
    key = jax.random.PRNGKey(0)
    N, C, H, W = 2, 4, 16, 16
    x = jax.random.normal(key, (N, C, H, W), dtype=jnp.float32)

    # 1) grouped-conv channel order, f32 (exercises the flattened lane-dense
    #    output path, since Wh = 8 < 128).
    y0 = jax.block_until_ready(
        haar_downsampling_fwd(x, rebalance=1.0, order_by_wavelet=False))
    r0 = _haar_reference(x, rebalance=1.0, order_by_wavelet=False)
    assert y0.shape == (N, 4 * C, H // 2, W // 2), y0.shape
    assert jnp.allclose(y0, r0, atol=1e-5, rtol=1e-5), "mismatch (no permute)"

    # 2) order_by_wavelet with a non-trivial rebalance factor.
    y1 = jax.block_until_ready(
        haar_downsampling_fwd(x, rebalance=0.5, order_by_wavelet=True))
    r1 = _haar_reference(x, rebalance=0.5, order_by_wavelet=True)
    assert y1.shape == (N, 4 * C, H // 2, W // 2), y1.shape
    assert jnp.allclose(y1, r1, atol=1e-5, rtol=1e-5), "mismatch (permute)"

    # 3) wide input: exercises the chunked (K=256) column butterfly and the
    #    unflattened (Wh % 128 == 0) output path.
    xw = jax.random.normal(jax.random.PRNGKey(1), (1, 2, 8, 512),
                           dtype=jnp.float32)
    y2 = jax.block_until_ready(
        haar_downsampling_fwd(xw, rebalance=1.0, order_by_wavelet=False))
    r2 = _haar_reference(xw, rebalance=1.0, order_by_wavelet=False)
    assert y2.shape == (1, 8, 4, 256), y2.shape
    assert jnp.allclose(y2, r2, atol=1e-4, rtol=1e-4), "mismatch (wide)"

    # 4) bf16 input: +-1 bf16 MXU constants, f32 accumulation, f32 epilogue fac.
    xb = x.astype(jnp.bfloat16)
    y3 = jax.block_until_ready(
        haar_downsampling_fwd(xb, rebalance=1.0, order_by_wavelet=False))
    r3 = _haar_reference(xb.astype(jnp.float32), rebalance=1.0,
                         order_by_wavelet=False)
    assert y3.dtype == jnp.bfloat16 and y3.shape == (N, 4 * C, H // 2, W // 2)
    assert jnp.allclose(y3.astype(jnp.float32), r3, atol=5e-2, rtol=5e-2), \
        "mismatch (bf16)"

    print("KERNEL_OK")
</pallas_src>

<mosaic_0001>
module attributes {stable_mosaic.version = 11 : i64} {
  func.func @_haar_kernel(%arg0: i32, %arg1: i32, %arg2: memref<8x8x32xf32, #tpu.memory_space<vmem>>, %arg3: memref<16x8xf32, #tpu.memory_space<vmem>>, %arg4: memref<16x8xf32, #tpu.memory_space<vmem>>, %arg5: memref<8x4x64xf32, #tpu.memory_space<vmem>>) attributes {dimension_semantics = [#tpu.dimension_semantics<parallel>, #tpu.dimension_semantics<parallel>], iteration_bounds = array<i64: 1, 1>, scalar_prefetch = 0 : i64, scratch_operands = 0 : i64, tpu.core_type = #tpu.core_type<tc>, window_params = [{transform_indices = @transform_0, window_bounds = array<i64: 8, 8, 32>}, {pipeline_mode = #tpu.pipeline_mode<synchronous>, transform_indices = @transform_1, window_bounds = array<i64: 16, 8>}, {pipeline_mode = #tpu.pipeline_mode<synchronous>, transform_indices = @transform_2, window_bounds = array<i64: 16, 8>}, {transform_indices = @transform_3, window_bounds = array<i64: 8, 4, 64>}]} {
    %c0 = arith.constant 0 : index
    %c0_0 = arith.constant 0 : index
    %c0_1 = arith.constant 0 : index
    %0 = vector.load %arg2[%c0, %c0_0, %c0_1] : memref<8x8x32xf32, #tpu.memory_space<vmem>>, vector<8x8x16xf32>
    %c0_2 = arith.constant 0 : index
    %c0_3 = arith.constant 0 : index
    %c16 = arith.constant 16 : index
    %1 = vector.load %arg2[%c0_2, %c0_3, %c16] : memref<8x8x32xf32, #tpu.memory_space<vmem>>, vector<8x8x16xf32>
    %2 = arith.addf %0, %1 : vector<8x8x16xf32>
    %3 = vector.shape_cast %2 : vector<8x8x16xf32> to vector<64x16xf32>
    %4 = arith.subf %0, %1 : vector<8x8x16xf32>
    %5 = vector.shape_cast %4 : vector<8x8x16xf32> to vector<64x16xf32>
    %c0_4 = arith.constant 0 : index
    %c0_5 = arith.constant 0 : index
    %6 = vector.load %arg3[%c0_4, %c0_5] : memref<16x8xf32, #tpu.memory_space<vmem>>, vector<16x8xf32>
    %c0_6 = arith.constant 0 : index
    %c0_7 = arith.constant 0 : index
    %7 = vector.load %arg4[%c0_6, %c0_7] : memref<16x8xf32, #tpu.memory_space<vmem>>, vector<16x8xf32>
    %cst = arith.constant dense<0.000000e+00> : vector<64x8xf32>
    %8 = tpu.matmul %3, %6, %cst {dimension_numbers = #tpu.dot_dimension_numbers<[1], [0], [0], [1], [0, 0, 1, 1], [], []>} : vector<64x16xf32>, vector<16x8xf32>, vector<64x8xf32> -> vector<64x8xf32>
    %cst_8 = arith.constant dense<0.000000e+00> : vector<64x8xf32>
    %9 = tpu.matmul %3, %7, %cst_8 {dimension_numbers = #tpu.dot_dimension_numbers<[1], [0], [0], [1], [0, 0, 1, 1], [], []>} : vector<64x16xf32>, vector<16x8xf32>, vector<64x8xf32> -> vector<64x8xf32>
    %cst_9 = arith.constant dense<0.000000e+00> : vector<64x8xf32>
    %10 = tpu.matmul %5, %6, %cst_9 {dimension_numbers = #tpu.dot_dimension_numbers<[1], [0], [0], [1], [0, 0, 1, 1], [], []>} : vector<64x16xf32>, vector<16x8xf32>, vector<64x8xf32> -> vector<64x8xf32>
    %cst_10 = arith.constant dense<0.000000e+00> : vector<64x8xf32>
    %11 = tpu.matmul %5, %7, %cst_10 {dimension_numbers = #tpu.dot_dimension_numbers<[1], [0], [0], [1], [0, 0, 1, 1], [], []>} : vector<64x16xf32>, vector<16x8xf32>, vector<64x8xf32> -> vector<64x8xf32>
    %12 = vector.shape_cast %8 : vector<64x8xf32> to vector<8x8x8xf32>
    %13 = vector.extract_strided_slice %12 {offsets = [0, 0, 0], sizes = [8, 1, 8], strides = [1, 1, 1]} : vector<8x8x8xf32> to vector<8x1x8xf32>
    %14 = vector.shape_cast %13 : vector<8x1x8xf32> to vector<8x8xf32>
    %15 = vector.extract_strided_slice %12 {offsets = [0, 1, 0], sizes = [8, 1, 8], strides = [1, 1, 1]} : vector<8x8x8xf32> to vector<8x1x8xf32>
    %16 = vector.shape_cast %15 : vector<8x1x8xf32> to vector<8x8xf32>
    %17 = vector.extract_strided_slice %12 {offsets = [0, 2, 0], sizes = [8, 1, 8], strides = [1, 1, 1]} : vector<8x8x8xf32> to vector<8x1x8xf32>
    %18 = vector.shape_cast %17 : vector<8x1x8xf32> to vector<8x8xf32>
    %19 = vector.extract_strided_slice %12 {offsets = [0, 3, 0], sizes = [8, 1, 8], strides = [1, 1, 1]} : vector<8x8x8xf32> to vector<8x1x8xf32>
    %20 = vector.shape_cast %19 : vector<8x1x8xf32> to vector<8x8xf32>
    %21 = vector.extract_strided_slice %12 {offsets = [0, 4, 0], sizes = [8, 1, 8], strides = [1, 1, 1]} : vector<8x8x8xf32> to vector<8x1x8xf32>
    %22 = vector.shape_cast %21 : vector<8x1x8xf32> to vector<8x8xf32>
    %23 = vector.extract_strided_slice %12 {offsets = [0, 5, 0], sizes = [8, 1, 8], strides = [1, 1, 1]} : vector<8x8x8xf32> to vector<8x1x8xf32>
    %24 = vector.shape_cast %23 : vector<8x1x8xf32> to vector<8x8xf32>
    %25 = vector.extract_strided_slice %12 {offsets = [0, 6, 0], sizes = [8, 1, 8], strides = [1, 1, 1]} : vector<8x8x8xf32> to vector<8x1x8xf32>
    %26 = vector.shape_cast %25 : vector<8x1x8xf32> to vector<8x8xf32>
    %27 = vector.extract_strided_slice %12 {offsets = [0, 7, 0], sizes = [8, 1, 8], strides = [1, 1, 1]} : vector<8x8x8xf32> to vector<8x1x8xf32>
    %28 = vector.shape_cast %27 : vector<8x1x8xf32> to vector<8x8xf32>
    %29 = tpu.concatenate %14, %16, %18, %20, %22, %24, %26, %28 in 1 : vector<8x8xf32>, vector<8x8xf32>, vector<8x8xf32>, vector<8x8xf32>, vector<8x8xf32>, vector<8x8xf32>, vector<8x8xf32>, vector<8x8xf32> -> vector<8x64xf32>
    %c0_11 = arith.constant 0 : index
    %c0_12 = arith.constant 0 : index
    %c0_13 = arith.constant 0 : index
    %30 = vector.load %arg5[%c0_11, %c0_12, %c0_13] : memref<8x4x64xf32, #tpu.memory_space<vmem>>, vector<8x1x64xf32>
    %31 = vector.shape_cast %30 : vector<8x1x64xf32> to vector<8x64xf32>
    %32 = vector.shape_cast %29 : vector<8x64xf32> to vector<8x1x64xf32>
    tpu.vector_store %arg5[%c0_11, %c0_12, %c0_13], %32 {strides = array<i32>} : memref<8x4x64xf32, #tpu.memory_space<vmem>>, vector<8x1x64xf32>,
    %33 = vector.shape_cast %9 : vector<64x8xf32> to vector<8x8x8xf32>
    %34 = vector.extract_strided_slice %33 {offsets = [0, 0, 0], sizes = [8, 1, 8], strides = [1, 1, 1]} : vector<8x8x8xf32> to vector<8x1x8xf32>
    %35 = vector.shape_cast %34 : vector<8x1x8xf32> to vector<8x8xf32>
    %36 = vector.extract_strided_slice %33 {offsets = [0, 1, 0], sizes = [8, 1, 8], strides = [1, 1, 1]} : vector<8x8x8xf32> to vector<8x1x8xf32>
    %37 = vector.shape_cast %36 : vector<8x1x8xf32> to vector<8x8xf32>
    %38 = vector.extract_strided_slice %33 {offsets = [0, 2, 0], sizes = [8, 1, 8], strides = [1, 1, 1]} : vector<8x8x8xf32> to vector<8x1x8xf32>
    %39 = vector.shape_cast %38 : vector<8x1x8xf32> to vector<8x8xf32>
    %40 = vector.extract_strided_slice %33 {offsets = [0, 3, 0], sizes = [8, 1, 8], strides = [1, 1, 1]} : vector<8x8x8xf32> to vector<8x1x8xf32>
    %41 = vector.shape_cast %40 : vector<8x1x8xf32> to vector<8x8xf32>
    %42 = vector.extract_strided_slice %33 {offsets = [0, 4, 0], sizes = [8, 1, 8], strides = [1, 1, 1]} : vector<8x8x8xf32> to vector<8x1x8xf32>
    %43 = vector.shape_cast %42 : vector<8x1x8xf32> to vector<8x8xf32>
    %44 = vector.extract_strided_slice %33 {offsets = [0, 5, 0], sizes = [8, 1, 8], strides = [1, 1, 1]} : vector<8x8x8xf32> to vector<8x1x8xf32>
    %45 = vector.shape_cast %44 : vector<8x1x8xf32> to vector<8x8xf32>
    %46 = vector.extract_strided_slice %33 {offsets = [0, 6, 0], sizes = [8, 1, 8], strides = [1, 1, 1]} : vector<8x8x8xf32> to vector<8x1x8xf32>
    %47 = vector.shape_cast %46 : vector<8x1x8xf32> to vector<8x8xf32>
    %48 = vector.extract_strided_slice %33 {offsets = [0, 7, 0], sizes = [8, 1, 8], strides = [1, 1, 1]} : vector<8x8x8xf32> to vector<8x1x8xf32>
    %49 = vector.shape_cast %48 : vector<8x1x8xf32> to vector<8x8xf32>
    %50 = tpu.concatenate %35, %37, %39, %41, %43, %45, %47, %49 in 1 : vector<8x8xf32>, vector<8x8xf32>, vector<8x8xf32>, vector<8x8xf32>, vector<8x8xf32>, vector<8x8xf32>, vector<8x8xf32>, vector<8x8xf32> -> vector<8x64xf32>
    %c0_14 = arith.constant 0 : index
    %c1 = arith.constant 1 : index
    %c0_15 = arith.constant 0 : index
    %51 = vector.load %arg5[%c0_14, %c1, %c0_15] : memref<8x4x64xf32, #tpu.memory_space<vmem>>, vector<8x1x64xf32>
    %52 = vector.shape_cast %51 : vector<8x1x64xf32> to vector<8x64xf32>
    %53 = vector.shape_cast %50 : vector<8x64xf32> to vector<8x1x64xf32>
    tpu.vector_store %arg5[%c0_14, %c1, %c0_15], %53 {strides = array<i32>} : memref<8x4x64xf32, #tpu.memory_space<vmem>>, vector<8x1x64xf32>,
    %54 = vector.shape_cast %10 : vector<64x8xf32> to vector<8x8x8xf32>
    %55 = vector.extract_strided_slice %54 {offsets = [0, 0, 0], sizes = [8, 1, 8], strides = [1, 1, 1]} : vector<8x8x8xf32> to vector<8x1x8xf32>
    %56 = vector.shape_cast %55 : vector<8x1x8xf32> to vector<8x8xf32>
    %57 = vector.extract_strided_slice %54 {offsets = [0, 1, 0], sizes = [8, 1, 8], strides = [1, 1, 1]} : vector<8x8x8xf32> to vector<8x1x8xf32>
    %58 = vector.shape_cast %57 : vector<8x1x8xf32> to vector<8x8xf32>
    %59 = vector.extract_strided_slice %54 {offsets = [0, 2, 0], sizes = [8, 1, 8], strides = [1, 1, 1]} : vector<8x8x8xf32> to vector<8x1x8xf32>
    %60 = vector.shape_cast %59 : vector<8x1x8xf32> to vector<8x8xf32>
    %61 = vector.extract_strided_slice %54 {offsets = [0, 3, 0], sizes = [8, 1, 8], strides = [1, 1, 1]} : vector<8x8x8xf32> to vector<8x1x8xf32>
    %62 = vector.shape_cast %61 : vector<8x1x8xf32> to vector<8x8xf32>
    %63 = vector.extract_strided_slice %54 {offsets = [0, 4, 0], sizes = [8, 1, 8], strides = [1, 1, 1]} : vector<8x8x8xf32> to vector<8x1x8xf32>
    %64 = vector.shape_cast %63 : vector<8x1x8xf32> to vector<8x8xf32>
    %65 = vector.extract_strided_slice %54 {offsets = [0, 5, 0], sizes = [8, 1, 8], strides = [1, 1, 1]} : vector<8x8x8xf32> to vector<8x1x8xf32>
    %66 = vector.shape_cast %65 : vector<8x1x8xf32> to vector<8x8xf32>
    %67 = vector.extract_strided_slice %54 {offsets = [0, 6, 0], sizes = [8, 1, 8], strides = [1, 1, 1]} : vector<8x8x8xf32> to vector<8x1x8xf32>
    %68 = vector.shape_cast %67 : vector<8x1x8xf32> to vector<8x8xf32>
    %69 = vector.extract_strided_slice %54 {offsets = [0, 7, 0], sizes = [8, 1, 8], strides = [1, 1, 1]} : vector<8x8x8xf32> to vector<8x1x8xf32>
    %70 = vector.shape_cast %69 : vector<8x1x8xf32> to vector<8x8xf32>
    %71 = tpu.concatenate %56, %58, %60, %62, %64, %66, %68, %70 in 1 : vector<8x8xf32>, vector<8x8xf32>, vector<8x8xf32>, vector<8x8xf32>, vector<8x8xf32>, vector<8x8xf32>, vector<8x8xf32>, vector<8x8xf32> -> vector<8x64xf32>
    %c0_16 = arith.constant 0 : index
    %c2 = arith.constant 2 : index
    %c0_17 = arith.constant 0 : index
    %72 = vector.load %arg5[%c0_16, %c2, %c0_17] : memref<8x4x64xf32, #tpu.memory_space<vmem>>, vector<8x1x64xf32>
    %73 = vector.shape_cast %72 : vector<8x1x64xf32> to vector<8x64xf32>
    %74 = vector.shape_cast %71 : vector<8x64xf32> to vector<8x1x64xf32>
    tpu.vector_store %arg5[%c0_16, %c2, %c0_17], %74 {strides = array<i32>} : memref<8x4x64xf32, #tpu.memory_space<vmem>>, vector<8x1x64xf32>,
    %75 = vector.shape_cast %11 : vector<64x8xf32> to vector<8x8x8xf32>
    %76 = vector.extract_strided_slice %75 {offsets = [0, 0, 0], sizes = [8, 1, 8], strides = [1, 1, 1]} : vector<8x8x8xf32> to vector<8x1x8xf32>
    %77 = vector.shape_cast %76 : vector<8x1x8xf32> to vector<8x8xf32>
    %78 = vector.extract_strided_slice %75 {offsets = [0, 1, 0], sizes = [8, 1, 8], strides = [1, 1, 1]} : vector<8x8x8xf32> to vector<8x1x8xf32>
    %79 = vector.shape_cast %78 : vector<8x1x8xf32> to vector<8x8xf32>
    %80 = vector.extract_strided_slice %75 {offsets = [0, 2, 0], sizes = [8, 1, 8], strides = [1, 1, 1]} : vector<8x8x8xf32> to vector<8x1x8xf32>
    %81 = vector.shape_cast %80 : vector<8x1x8xf32> to vector<8x8xf32>
    %82 = vector.extract_strided_slice %75 {offsets = [0, 3, 0], sizes = [8, 1, 8], strides = [1, 1, 1]} : vector<8x8x8xf32> to vector<8x1x8xf32>
    %83 = vector.shape_cast %82 : vector<8x1x8xf32> to vector<8x8xf32>
    %84 = vector.extract_strided_slice %75 {offsets = [0, 4, 0], sizes = [8, 1, 8], strides = [1, 1, 1]} : vector<8x8x8xf32> to vector<8x1x8xf32>
    %85 = vector.shape_cast %84 : vector<8x1x8xf32> to vector<8x8xf32>
    %86 = vector.extract_strided_slice %75 {offsets = [0, 5, 0], sizes = [8, 1, 8], strides = [1, 1, 1]} : vector<8x8x8xf32> to vector<8x1x8xf32>
    %87 = vector.shape_cast %86 : vector<8x1x8xf32> to vector<8x8xf32>
    %88 = vector.extract_strided_slice %75 {offsets = [0, 6, 0], sizes = [8, 1, 8], strides = [1, 1, 1]} : vector<8x8x8xf32> to vector<8x1x8xf32>
    %89 = vector.shape_cast %88 : vector<8x1x8xf32> to vector<8x8xf32>
    %90 = vector.extract_strided_slice %75 {offsets = [0, 7, 0], sizes = [8, 1, 8], strides = [1, 1, 1]} : vector<8x8x8xf32> to vector<8x1x8xf32>
    %91 = vector.shape_cast %90 : vector<8x1x8xf32> to vector<8x8xf32>
    %92 = tpu.concatenate %77, %79, %81, %83, %85, %87, %89, %91 in 1 : vector<8x8xf32>, vector<8x8xf32>, vector<8x8xf32>, vector<8x8xf32>, vector<8x8xf32>, vector<8x8xf32>, vector<8x8xf32>, vector<8x8xf32> -> vector<8x64xf32>
    %c0_18 = arith.constant 0 : index
    %c3 = arith.constant 3 : index
    %c0_19 = arith.constant 0 : index
    %93 = vector.load %arg5[%c0_18, %c3, %c0_19] : memref<8x4x64xf32, #tpu.memory_space<vmem>>, vector<8x1x64xf32>
    %94 = vector.shape_cast %93 : vector<8x1x64xf32> to vector<8x64xf32>
    %95 = vector.shape_cast %92 : vector<8x64xf32> to vector<8x1x64xf32>
    tpu.vector_store %arg5[%c0_18, %c3, %c0_19], %95 {strides = array<i32>} : memref<8x4x64xf32, #tpu.memory_space<vmem>>, vector<8x1x64xf32>,
    return
  }
  func.func @transform_0(%arg0: i32, %arg1: i32) -> (i32, i32, i32) {
    %c0_i32 = arith.constant 0 : i32
    %c0_i32_0 = arith.constant 0 : i32
    return %arg0, %arg1, %c0_i32 : i32, i32, i32
  }
  func.func @transform_1(%arg0: i32, %arg1: i32) -> (i32, i32) {
    %c0_i32 = arith.constant 0 : i32
    %c0_i32_0 = arith.constant 0 : i32
    %c0_i32_1 = arith.constant 0 : i32
    return %c0_i32, %c0_i32_0 : i32, i32
  }
  func.func @transform_2(%arg0: i32, %arg1: i32) -> (i32, i32) {
    %c0_i32 = arith.constant 0 : i32
    %c0_i32_0 = arith.constant 0 : i32
    %c0_i32_1 = arith.constant 0 : i32
    return %c0_i32, %c0_i32_0 : i32, i32
  }
  func.func @transform_3(%arg0: i32, %arg1: i32) -> (i32, i32, i32) {
    %c0_i32 = arith.constant 0 : i32
    %c0_i32_0 = arith.constant 0 : i32
    return %arg0, %c0_i32, %arg1 : i32, i32, i32
  }
}

</mosaic_0001>

<llo_original>
// kernel: tpu_custom_call.1
$region0: #{tpu_custom_call.1}
  #allocation0 [shape = 'u32[]', space=smem, size = 0x4, offset = 0x4, fixed_abs, tag = 'smem constant byte address 0x4 - core index']
  #allocation1 [shape = 'u32[144,128]{1,0:T(1,128)}', space=vmem, size = 0x12000, scoped, tag = 'internal scratch']
  %s0 = inlined_call_operand.hbm [shape: f32[8,8,32], index: 0, kind: input, shape index: {}]
  %s1 = inlined_call_operand.vmem [shape: f32[16,8], index: 1, kind: input, shape index: {}]
  %s2 = inlined_call_operand.vmem [shape: f32[16,8], index: 2, kind: input, shape index: {}]
  %s3 = inlined_call_operand.hbm [shape: f32[8,4,64], index: 3, kind: output, shape index: {}]
  %s4 = sld [smem:[#allocation0]]
  $region26: #{tpu_custom_call.1} parent=0
    _
  %s6 = ssub.s32 1, %s4
  %s7 = scalar_select 0, %s6, %s4
  $region1: #{tpu_custom_call.1} parent=0
    #allocation2 [shape = 'u8[32768]{0}', space=vmem, size = 0x8000, scoped, tag = 'input window, operand 0, single buffered']
    #allocation3 [shape = 's32[1]{0}', space=sflag, size = 0x4, scoped, tag = 'scoped memory for tpu_custom_call.1']
    #allocation4 [shape = 's32[1]{0}', space=sflag, size = 0x4, scoped, tag = 'scoped memory for tpu_custom_call.1']
    #allocation5 [shape = 'u8[16384]{0}', space=vmem, size = 0x4000, scoped, tag = 'output window, operand 0, single buffered']
    %8 = vsyncpa [#allocation3], 0
    %9 = vsyncpa [#allocation4], 0
    // Predicated region
    $region2: #{tpu_custom_call.1} parent=1 // pred_check
      _
    $region3: #{tpu_custom_call.1} parent=1 // pred_check_branch
      %11 = sbr.rel (0) target = $region5
    $region4: #{tpu_custom_call.1} parent=1 // pred_region
      %s13 = ssub.s32 1024, 1024
      %14 = vsyncadd [#allocation3], %s13
      %s15 = sshll.u32 [#allocation2], 4
      %s16 = int_to_ptr.vmem [resolvable:$true] %s15
      %21 = dma.hbm_to_vmem [thread:$0]  %s0, 1024, %s16, [#allocation3], 128, 128, 8
    $region5: #{tpu_custom_call.1} parent=1 // pred_fallthru
      _
    // Predicated region
    $region6: #{tpu_custom_call.1} parent=1 // pred_check
      _
    $region7: #{tpu_custom_call.1} parent=1 // pred_check_branch
      %23 = sbr.rel (0) target = $region9
    $region8: #{tpu_custom_call.1} parent=1 // pred_region
      _
    $region9: #{tpu_custom_call.1} parent=1 // pred_fallthru
      _
    // Predicated region
    $region10: #{tpu_custom_call.1} parent=1 // pred_check
      _
    $region11: #{tpu_custom_call.1} parent=1 // pred_check_branch
      %25 = sbr.rel (0) target = $region13
    $region12: #{tpu_custom_call.1} parent=1 // pred_region
      _
    $region13: #{tpu_custom_call.1} parent=1 // pred_fallthru
      _
    // Predicated region
    $region14: #{tpu_custom_call.1} parent=1 // pred_check
      _
    $region15: #{tpu_custom_call.1} parent=1 // pred_check_branch
      %27 = sbr.rel (0) target = $region17
    $region16: #{tpu_custom_call.1} parent=1 // pred_region
      %28 = dma.done [#allocation3], 1024
    $region17: #{tpu_custom_call.1} parent=1 // pred_fallthru
      _
    %v29 = vld [vmem:[#allocation2] sm:$0xff]
    %v30 = vld [vmem:[#allocation2 + $0x8] sm:$0xff]
    %v31 = vld [vmem:[#allocation2 + $0x10] sm:$0xff]
    %v32 = vld [vmem:[#allocation2 + $0x18] sm:$0xff]
    %v33 = vld [vmem:[#allocation2 + $0x20] sm:$0xff]
    %v34 = vld [vmem:[#allocation2 + $0x28] sm:$0xff]
    %v35 = vld [vmem:[#allocation2 + $0x30] sm:$0xff]
    %v36 = vld [vmem:[#allocation2 + $0x38] sm:$0xff]
    %45 = vrot.lane.b32.xlu0 %v29, 112
    %v46 = vpop.permute.xlu0 %45
    %47 = vrot.lane.b32.xlu0 %v30, 112
    %v48 = vpop.permute.xlu0 %47
    %49 = vrot.lane.b32.xlu0 %v31, 112
    %v50 = vpop.permute.xlu0 %49
    %51 = vrot.lane.b32.xlu0 %v32, 112
    %v52 = vpop.permute.xlu0 %51
    %53 = vrot.lane.b32.xlu0 %v33, 112
    %v54 = vpop.permute.xlu0 %53
    %55 = vrot.lane.b32.xlu0 %v34, 112
    %v56 = vpop.permute.xlu0 %55
    %57 = vrot.lane.b32.xlu0 %v35, 112
    %v58 = vpop.permute.xlu0 %57
    %59 = vrot.lane.b32.xlu0 %v36, 112
    %v60 = vpop.permute.xlu0 %59
    %v69 = vadd.f32 %v29, %v46
    %v70 = vadd.f32 %v30, %v48
    %v71 = vadd.f32 %v31, %v50
    %v72 = vadd.f32 %v32, %v52
    %v73 = vadd.f32 %v33, %v54
    %v74 = vadd.f32 %v34, %v56
    %v75 = vadd.f32 %v35, %v58
    %v76 = vadd.f32 %v36, %v60
    %v77 = vsub.f32 %v29, %v46
    %v78 = vsub.f32 %v30, %v48
    %v79 = vsub.f32 %v31, %v50
    %v80 = vsub.f32 %v32, %v52
    %v81 = vsub.f32 %v33, %v54
    %v82 = vsub.f32 %v34, %v56
    %v83 = vsub.f32 %v35, %v58
    %v84 = vsub.f32 %v36, %v60
    %v85 = vld [vmem:[%s1] sm:$0xff]
    %v86 = vld [vmem:[%s1 + $0x8] sm:$0xff]
    %v87 = vld [vmem:[%s2] sm:$0xff]
    %v88 = vld [vmem:[%s2 + $0x8] sm:$0xff]
    %vm89 = vcmask 130048
    %v91 = vsel %vm89, %v69, 0
    %v94 = vsel %vm89, %v70, 0
    %v97 = vsel %vm89, %v71, 0
    %v100 = vsel %vm89, %v72, 0
    %v103 = vsel %vm89, %v73, 0
    %v106 = vsel %vm89, %v74, 0
    %v109 = vsel %vm89, %v75, 0
    %v112 = vsel %vm89, %v76, 0
    %114 = vmatprep.subr.mxu0 0.0
    %115 = vmatpush1.msra.mxu0 0.0
    %116 = vmatprep.subr.mxu0 0.0
    %117 = vmatpush1.msra.mxu0 0.0
    %118 = vmatprep.subr.mxu0 0.0
    %119 = vmatpush1.msra.mxu0 0.0
    %120 = vmatprep.subr.mxu0 0.0
    %121 = vmatpush1.msra.mxu0 0.0
    %122 = vmatprep.subr.mxu0 0.0
    %123 = vmatpush1.msra.mxu0 0.0
    %124 = vmatprep.subr.mxu0 0.0
    %125 = vmatpush1.msra.mxu0 0.0
    %126 = vmatprep.subr.mxu0 0.0
    %127 = vmatpush1.msra.mxu0 0.0
    %128 = vmatprep.subr.mxu0 0.0
    %129 = vmatpush1.msra.mxu0 0.0
    %130 = vmatprep.subr.mxu0 0.0
    %131 = vmatpush1.msra.mxu0 0.0
    %132 = vmatprep.subr.mxu0 0.0
    %133 = vmatpush1.msra.mxu0 0.0
    %134 = vmatprep.subr.mxu0 0.0
    %135 = vmatpush1.msra.mxu0 0.0
    %136 = vmatprep.subr.mxu0 0.0
    %137 = vmatpush1.msra.mxu0 0.0
    %138 = vmatprep.subr.mxu0 0.0
    %139 = vmatpush1.msra.mxu0 0.0
    %140 = vmatprep.subr.mxu0 0.0
    %141 = vmatpush1.msra.mxu0 0.0
    %142 = vmatprep.subr.mxu0 0.0
    %143 = vmatpush1.msra.mxu0 %v86
    %144 = vmatprep.subr.mxu0 0.0
    %145 = vmatpush1.msra.mxu0 %v85
    %146 = vmatprep.subr.mxu0 0.0
    %147 = vmatpush2.msra.mxu0 0.0
    %148 = vmatprep.subr.mxu0 0.0
    %149 = vmatpush2.msra.mxu0 0.0
    %150 = vmatprep.subr.mxu0 0.0
    %151 = vmatpush2.msra.mxu0 0.0
    %152 = vmatprep.subr.mxu0 0.0
    %153 = vmatpush2.msra.mxu0 0.0
    %154 = vmatprep.subr.mxu0 0.0
    %155 = vmatpush2.msra.mxu0 0.0
    %156 = vmatprep.subr.mxu0 0.0
    %157 = vmatpush2.msra.mxu0 0.0
    %158 = vmatprep.subr.mxu0 0.0
    %159 = vmatpush2.msra.mxu0 0.0
    %160 = vmatprep.subr.mxu0 0.0
    %161 = vmatpush2.msra.mxu0 0.0
    %162 = vmatprep.subr.mxu0 0.0
    %163 = vmatpush2.msra.mxu0 0.0
    %164 = vmatprep.subr.mxu0 0.0
    %165 = vmatpush2.msra.mxu0 0.0
    %166 = vmatprep.subr.mxu0 0.0
    %167 = vmatpush2.msra.mxu0 0.0
    %168 = vmatprep.subr.mxu0 0.0
    %169 = vmatpush2.msra.mxu0 0.0
    %170 = vmatprep.subr.mxu0 0.0
    %171 = vmatpush2.msra.mxu0 0.0
    %172 = vmatprep.subr.mxu0 0.0
    %173 = vmatpush2.msra.mxu0 0.0
    %174 = vmatprep.subr.mxu0 0.0
    %175 = vmatpush2.msra.mxu0 0.0
    %176 = vmatprep.subr.mxu0 0.0
    %177 = vmatpush2.msra.mxu0 0.0
    %178 = vmatprep.mubr.f32.mxu0 0.0
    %179 = vmatmul.mubr.f32.gmra.mxu0 %v91
    %v180 = vpop.f32.mrf.mxu0
    %v181 = vadd.f32 0.0, %v180
    %v182 = vpop.f32.mrf.mxu0
    %183 = vmatprep.mubr.f32.mxu0 0.0
    %184 = vmatmul.mubr.f32.gmra.mxu0 %v94
    %v185 = vpop.f32.mrf.mxu0
    %v186 = vadd.f32 0.0, %v185
    %v187 = vpop.f32.mrf.mxu0
    %188 = vmatprep.mubr.f32.mxu0 0.0
    %189 = vmatmul.mubr.f32.gmra.mxu0 %v97
    %v190 = vpop.f32.mrf.mxu0
    %v191 = vadd.f32 0.0, %v190
    %v192 = vpop.f32.mrf.mxu0
    %193 = vmatprep.mubr.f32.mxu0 0.0
    %194 = vmatmul.mubr.f32.gmra.mxu0 %v100
    %v195 = vpop.f32.mrf.mxu0
    %v196 = vadd.f32 0.0, %v195
    %v197 = vpop.f32.mrf.mxu0
    %198 = vmatprep.mubr.f32.mxu0 0.0
    %199 = vmatmul.mubr.f32.gmra.mxu0 %v103
    %v200 = vpop.f32.mrf.mxu0
    %v201 = vadd.f32 0.0, %v200
    %v202 = vpop.f32.mrf.mxu0
    %203 = vmatprep.mubr.f32.mxu0 0.0
    %204 = vmatmul.mubr.f32.gmra.mxu0 %v106
    %v205 = vpop.f32.mrf.mxu0
    %v206 = vadd.f32 0.0, %v205
    %v207 = vpop.f32.mrf.mxu0
    %208 = vmatprep.mubr.f32.mxu0 0.0
    %209 = vmatmul.mubr.f32.gmra.mxu0 %v109
    %v210 = vpop.f32.mrf.mxu0
    %v211 = vadd.f32 0.0, %v210
    %v212 = vpop.f32.mrf.mxu0
    %213 = vmatprep.mubr.f32.mxu0 0.0
    %214 = vmatmul.mubr.f32.gmra.mxu0 %v112
    %v215 = vpop.f32.mrf.mxu0
    %v216 = vadd.f32 0.0, %v215
    %v217 = vpop.f32.mrf.mxu0
    %218 = vdwg.mxu0
    %219 = vmatprep.subr.mxu0 0.0
    %220 = vmatpush1.msra.mxu0 0.0
    %221 = vmatprep.subr.mxu0 0.0
    %222 = vmatpush1.msra.mxu0 0.0
    %223 = vmatprep.subr.mxu0 0.0
    %224 = vmatpush1.msra.mxu0 0.0
    %225 = vmatprep.subr.mxu0 0.0
    %226 = vmatpush1.msra.mxu0 0.0
    %227 = vmatprep.subr.mxu0 0.0
    %228 = vmatpush1.msra.mxu0 0.0
    %229 = vmatprep.subr.mxu0 0.0
    %230 = vmatpush1.msra.mxu0 0.0
    %231 = vmatprep.subr.mxu0 0.0
    %232 = vmatpush1.msra.mxu0 0.0
    %233 = vmatprep.subr.mxu0 0.0
    %234 = vmatpush1.msra.mxu0 0.0
    %235 = vmatprep.subr.mxu0 0.0
    %236 = vmatpush1.msra.mxu0 0.0
    %237 = vmatprep.subr.mxu0 0.0
    %238 = vmatpush1.msra.mxu0 0.0
    %239 = vmatprep.subr.mxu0 0.0
    %240 = vmatpush1.msra.mxu0 0.0
    %241 = vmatprep.subr.mxu0 0.0
    %242 = vmatpush1.msra.mxu0 0.0
    %243 = vmatprep.subr.mxu0 0.0
    %244 = vmatpush1.msra.mxu0 0.0
    %245 = vmatprep.subr.mxu0 0.0
    %246 = vmatpush1.msra.mxu0 0.0
    %247 = vmatprep.subr.mxu0 0.0
    %248 = vmatpush1.msra.mxu0 %v88
    %249 = vmatprep.subr.mxu0 0.0
    %250 = vmatpush1.msra.mxu0 %v87
    %251 = vmatprep.subr.mxu0 0.0
    %252 = vmatpush2.msra.mxu0 0.0
    %253 = vmatprep.subr.mxu0 0.0
    %254 = vmatpush2.msra.mxu0 0.0
    %255 = vmatprep.subr.mxu0 0.0
    %256 = vmatpush2.msra.mxu0 0.0
    %257 = vmatprep.subr.mxu0 0.0
    %258 = vmatpush2.msra.mxu0 0.0
    %259 = vmatprep.subr.mxu0 0.0
    %260 = vmatpush2.msra.mxu0 0.0
    %261 = vmatprep.subr.mxu0 0.0
    %262 = vmatpush2.msra.mxu0 0.0
    %263 = vmatprep.subr.mxu0 0.0
    %264 = vmatpush2.msra.mxu0 0.0
    %265 = vmatprep.subr.mxu0 0.0
    %266 = vmatpush2.msra.mxu0 0.0
    %267 = vmatprep.subr.mxu0 0.0
    %268 = vmatpush2.msra.mxu0 0.0
    %269 = vmatprep.subr.mxu0 0.0
    %270 = vmatpush2.msra.mxu0 0.0
    %271 = vmatprep.subr.mxu0 0.0
    %272 = vmatpush2.msra.mxu0 0.0
    %273 = vmatprep.subr.mxu0 0.0
    %274 = vmatpush2.msra.mxu0 0.0
    %275 = vmatprep.subr.mxu0 0.0
    %276 = vmatpush2.msra.mxu0 0.0
    %277 = vmatprep.subr.mxu0 0.0
    %278 = vmatpush2.msra.mxu0 0.0
    %279 = vmatprep.subr.mxu0 0.0
    %280 = vmatpush2.msra.mxu0 0.0
    %281 = vmatprep.subr.mxu0 0.0
    %282 = vmatpush2.msra.mxu0 0.0
    %283 = vmatprep.mubr.f32.mxu0 0.0
    %284 = vmatmul.mubr.f32.gmra.mxu0 %v91
    %v285 = vpop.f32.mrf.mxu0
    %v286 = vadd.f32 0.0, %v285
    %v287 = vpop.f32.mrf.mxu0
    %288 = vmatprep.mubr.f32.mxu0 0.0
    %289 = vmatmul.mubr.f32.gmra.mxu0 %v94
    %v290 = vpop.f32.mrf.mxu0
    %v291 = vadd.f32 0.0, %v290
    %v292 = vpop.f32.mrf.mxu0
    %293 = vmatprep.mubr.f32.mxu0 0.0
    %294 = vmatmul.mubr.f32.gmra.mxu0 %v97
    %v295 = vpop.f32.mrf.mxu0
    %v296 = vadd.f32 0.0, %v295
    %v297 = vpop.f32.mrf.mxu0
    %298 = vmatprep.mubr.f32.mxu0 0.0
    %299 = vmatmul.mubr.f32.gmra.mxu0 %v100
    %v300 = vpop.f32.mrf.mxu0
    %v301 = vadd.f32 0.0, %v300
    %v302 = vpop.f32.mrf.mxu0
    %303 = vmatprep.mubr.f32.mxu0 0.0
    %304 = vmatmul.mubr.f32.gmra.mxu0 %v103
    %v305 = vpop.f32.mrf.mxu0
    %v306 = vadd.f32 0.0, %v305
    %v307 = vpop.f32.mrf.mxu0
    %308 = vmatprep.mubr.f32.mxu0 0.0
    %309 = vmatmul.mubr.f32.gmra.mxu0 %v106
    %v310 = vpop.f32.mrf.mxu0
    %v311 = vadd.f32 0.0, %v310
    %v312 = vpop.f32.mrf.mxu0
    %313 = vmatprep.mubr.f32.mxu0 0.0
    %314 = vmatmul.mubr.f32.gmra.mxu0 %v109
    %v315 = vpop.f32.mrf.mxu0
    %v316 = vadd.f32 0.0, %v315
    %v317 = vpop.f32.mrf.mxu0
    %318 = vmatprep.mubr.f32.mxu0 0.0
    %319 = vmatmul.mubr.f32.gmra.mxu0 %v112
    %v320 = vpop.f32.mrf.mxu0
    %v321 = vadd.f32 0.0, %v320
    %v322 = vpop.f32.mrf.mxu0
    %323 = vdwg.mxu0
    %v325 = vsel %vm89, %v77, 0
    %v328 = vsel %vm89, %v78, 0
    %v331 = vsel %vm89, %v79, 0
    %v334 = vsel %vm89, %v80, 0
    %v337 = vsel %vm89, %v81, 0
    %v340 = vsel %vm89, %v82, 0
    %v343 = vsel %vm89, %v83, 0
    %v346 = vsel %vm89, %v84, 0
    %348 = vmatprep.subr.mxu0 0.0
    %349 = vmatpush1.msra.mxu0 0.0
    %350 = vmatprep.subr.mxu0 0.0
    %351 = vmatpush1.msra.mxu0 0.0
    %352 = vmatprep.subr.mxu0 0.0
    %353 = vmatpush1.msra.mxu0 0.0
    %354 = vmatprep.subr.mxu0 0.0
    %355 = vmatpush1.msra.mxu0 0.0
    %356 = vmatprep.subr.mxu0 0.0
    %357 = vmatpush1.msra.mxu0 0.0
    %358 = vmatprep.subr.mxu0 0.0
    %359 = vmatpush1.msra.mxu0 0.0
    %360 = vmatprep.subr.mxu0 0.0
    %361 = vmatpush1.msra.mxu0 0.0
    %362 = vmatprep.subr.mxu0 0.0
    %363 = vmatpush1.msra.mxu0 0.0
    %364 = vmatprep.subr.mxu0 0.0
    %365 = vmatpush1.msra.mxu0 0.0
    %366 = vmatprep.subr.mxu0 0.0
    %367 = vmatpush1.msra.mxu0 0.0
    %368 = vmatprep.subr.mxu0 0.0
    %369 = vmatpush1.msra.mxu0 0.0
    %370 = vmatprep.subr.mxu0 0.0
    %371 = vmatpush1.msra.mxu0 0.0
    %372 = vmatprep.subr.mxu0 0.0
    %373 = vmatpush1.msra.mxu0 0.0
    %374 = vmatprep.subr.mxu0 0.0
    %375 = vmatpush1.msra.mxu0 0.0
    %376 = vmatprep.subr.mxu0 0.0
    %377 = vmatpush1.msra.mxu0 %v86
    %378 = vmatprep.subr.mxu0 0.0
    %379 = vmatpush1.msra.mxu0 %v85
    %380 = vmatprep.subr.mxu0 0.0
    %381 = vmatpush2.msra.mxu0 0.0
    %382 = vmatprep.subr.mxu0 0.0
    %383 = vmatpush2.msra.mxu0 0.0
    %384 = vmatprep.subr.mxu0 0.0
    %385 = vmatpush2.msra.mxu0 0.0
    %386 = vmatprep.subr.mxu0 0.0
    %387 = vmatpush2.msra.mxu0 0.0
    %388 = vmatprep.subr.mxu0 0.0
    %389 = vmatpush2.msra.mxu0 0.0
    %390 = vmatprep.subr.mxu0 0.0
    %391 = vmatpush2.msra.mxu0 0.0
    %392 = vmatprep.subr.mxu0 0.0
    %393 = vmatpush2.msra.mxu0 0.0
    %394 = vmatprep.subr.mxu0 0.0
    %395 = vmatpush2.msra.mxu0 0.0
    %396 = vmatprep.subr.mxu0 0.0
    %397 = vmatpush2.msra.mxu0 0.0
    %398 = vmatprep.subr.mxu0 0.0
    %399 = vmatpush2.msra.mxu0 0.0
    %400 = vmatprep.subr.mxu0 0.0
    %401 = vmatpush2.msra.mxu0 0.0
    %402 = vmatprep.subr.mxu0 0.0
    %403 = vmatpush2.msra.mxu0 0.0
    %404 = vmatprep.subr.mxu0 0.0
    %405 = vmatpush2.msra.mxu0 0.0
    %406 = vmatprep.subr.mxu0 0.0
    %407 = vmatpush2.msra.mxu0 0.0
    %408 = vmatprep.subr.mxu0 0.0
    %409 = vmatpush2.msra.mxu0 0.0
    %410 = vmatprep.subr.mxu0 0.0
    %411 = vmatpush2.msra.mxu0 0.0
    %412 = vmatprep.mubr.f32.mxu0 0.0
    %413 = vmatmul.mubr.f32.gmra.mxu0 %v325
    %v414 = vpop.f32.mrf.mxu0
    %v415 = vadd.f32 0.0, %v414
    %v416 = vpop.f32.mrf.mxu0
    %417 = vmatprep.mubr.f32.mxu0 0.0
    %418 = vmatmul.mubr.f32.gmra.mxu0 %v328
    %v419 = vpop.f32.mrf.mxu0
    %v420 = vadd.f32 0.0, %v419
    %v421 = vpop.f32.mrf.mxu0
    %422 = vmatprep.mubr.f32.mxu0 0.0
    %423 = vmatmul.mubr.f32.gmra.mxu0 %v331
    %v424 = vpop.f32.mrf.mxu0
    %v425 = vadd.f32 0.0, %v424
    %v426 = vpop.f32.mrf.mxu0
    %427 = vmatprep.mubr.f32.mxu0 0.0
    %428 = vmatmul.mubr.f32.gmra.mxu0 %v334
    %v429 = vpop.f32.mrf.mxu0
    %v430 = vadd.f32 0.0, %v429
    %v431 = vpop.f32.mrf.mxu0
    %432 = vmatprep.mubr.f32.mxu0 0.0
    %433 = vmatmul.mubr.f32.gmra.mxu0 %v337
    %v434 = vpop.f32.mrf.mxu0
    %v435 = vadd.f32 0.0, %v434
    %v436 = vpop.f32.mrf.mxu0
    %437 = vmatprep.mubr.f32.mxu0 0.0
    %438 = vmatmul.mubr.f32.gmra.mxu0 %v340
    %v439 = vpop.f32.mrf.mxu0
    %v440 = vadd.f32 0.0, %v439
    %v441 = vpop.f32.mrf.mxu0
    %442 = vmatprep.mubr.f32.mxu0 0.0
    %443 = vmatmul.mubr.f32.gmra.mxu0 %v343
    %v444 = vpop.f32.mrf.mxu0
    %v445 = vadd.f32 0.0, %v444
    %v446 = vpop.f32.mrf.mxu0
    %447 = vmatprep.mubr.f32.mxu0 0.0
    %448 = vmatmul.mubr.f32.gmra.mxu0 %v346
    %v449 = vpop.f32.mrf.mxu0
    %v450 = vadd.f32 0.0, %v449
    %v451 = vpop.f32.mrf.mxu0
    %452 = vdwg.mxu0
    %453 = vmatprep.subr.mxu0 0.0
    %454 = vmatpush1.msra.mxu0 0.0
    %455 = vmatprep.subr.mxu0 0.0
    %456 = vmatpush1.msra.mxu0 0.0
    %457 = vmatprep.subr.mxu0 0.0
    %458 = vmatpush1.msra.mxu0 0.0
    %459 = vmatprep.subr.mxu0 0.0
    %460 = vmatpush1.msra.mxu0 0.0
    %461 = vmatprep.subr.mxu0 0.0
    %462 = vmatpush1.msra.mxu0 0.0
    %463 = vmatprep.subr.mxu0 0.0
    %464 = vmatpush1.msra.mxu0 0.0
    %465 = vmatprep.subr.mxu0 0.0
    %466 = vmatpush1.msra.mxu0 0.0
    %467 = vmatprep.subr.mxu0 0.0
    %468 = vmatpush1.msra.mxu0 0.0
    %469 = vmatprep.subr.mxu0 0.0
    %470 = vmatpush1.msra.mxu0 0.0
    %471 = vmatprep.subr.mxu0 0.0
    %472 = vmatpush1.msra.mxu0 0.0
    %473 = vmatprep.subr.mxu0 0.0
    %474 = vmatpush1.msra.mxu0 0.0
    %475 = vmatprep.subr.mxu0 0.0
    %476 = vmatpush1.msra.mxu0 0.0
    %477 = vmatprep.subr.mxu0 0.0
    %478 = vmatpush1.msra.mxu0 0.0
    %479 = vmatprep.subr.mxu0 0.0
    %480 = vmatpush1.msra.mxu0 0.0
    %481 = vmatprep.subr.mxu0 0.0
    %482 = vmatpush1.msra.mxu0 %v88
    %483 = vmatprep.subr.mxu0 0.0
    %484 = vmatpush1.msra.mxu0 %v87
    %485 = vmatprep.subr.mxu0 0.0
    %486 = vmatpush2.msra.mxu0 0.0
    %487 = vmatprep.subr.mxu0 0.0
    %488 = vmatpush2.msra.mxu0 0.0
    %489 = vmatprep.subr.mxu0 0.0
    %490 = vmatpush2.msra.mxu0 0.0
    %491 = vmatprep.subr.mxu0 0.0
    %492 = vmatpush2.msra.mxu0 0.0
    %493 = vmatprep.subr.mxu0 0.0
    %494 = vmatpush2.msra.mxu0 0.0
    %495 = vmatprep.subr.mxu0 0.0
    %496 = vmatpush2.msra.mxu0 0.0
    %497 = vmatprep.subr.mxu0 0.0
    %498 = vmatpush2.msra.mxu0 0.0
    %499 = vmatprep.subr.mxu0 0.0
    %500 = vmatpush2.msra.mxu0 0.0
    %501 = vmatprep.subr.mxu0 0.0
    %502 = vmatpush2.msra.mxu0 0.0
    %503 = vmatprep.subr.mxu0 0.0
    %504 = vmatpush2.msra.mxu0 0.0
    %505 = vmatprep.subr.mxu0 0.0
    %506 = vmatpush2.msra.mxu0 0.0
    %507 = vmatprep.subr.mxu0 0.0
    %508 = vmatpush2.msra.mxu0 0.0
    %509 = vmatprep.subr.mxu0 0.0
    %510 = vmatpush2.msra.mxu0 0.0
    %511 = vmatprep.subr.mxu0 0.0
    %512 = vmatpush2.msra.mxu0 0.0
    %513 = vmatprep.subr.mxu0 0.0
    %514 = vmatpush2.msra.mxu0 0.0
    %515 = vmatprep.subr.mxu0 0.0
    %516 = vmatpush2.msra.mxu0 0.0
    %517 = vmatprep.mubr.f32.mxu0 0.0
    %518 = vmatmul.mubr.f32.gmra.mxu0 %v325
    %v519 = vpop.f32.mrf.mxu0
    %v520 = vadd.f32 0.0, %v519
    %v521 = vpop.f32.mrf.mxu0
    %522 = vmatprep.mubr.f32.mxu0 0.0
    %523 = vmatmul.mubr.f32.gmra.mxu0 %v328
    %v524 = vpop.f32.mrf.mxu0
    %v525 = vadd.f32 0.0, %v524
    %v526 = vpop.f32.mrf.mxu0
    %527 = vmatprep.mubr.f32.mxu0 0.0
    %528 = vmatmul.mubr.f32.gmra.mxu0 %v331
    %v529 = vpop.f32.mrf.mxu0
    %v530 = vadd.f32 0.0, %v529
    %v531 = vpop.f32.mrf.mxu0
    %532 = vmatprep.mubr.f32.mxu0 0.0
    %533 = vmatmul.mubr.f32.gmra.mxu0 %v334
    %v534 = vpop.f32.mrf.mxu0
    %v535 = vadd.f32 0.0, %v534
    %v536 = vpop.f32.mrf.mxu0
    %537 = vmatprep.mubr.f32.mxu0 0.0
    %538 = vmatmul.mubr.f32.gmra.mxu0 %v337
    %v539 = vpop.f32.mrf.mxu0
    %v540 = vadd.f32 0.0, %v539
    %v541 = vpop.f32.mrf.mxu0
    %542 = vmatprep.mubr.f32.mxu0 0.0
    %543 = vmatmul.mubr.f32.gmra.mxu0 %v340
    %v544 = vpop.f32.mrf.mxu0
    %v545 = vadd.f32 0.0, %v544
    %v546 = vpop.f32.mrf.mxu0
    %547 = vmatprep.mubr.f32.mxu0 0.0
    %548 = vmatmul.mubr.f32.gmra.mxu0 %v343
    %v549 = vpop.f32.mrf.mxu0
    %v550 = vadd.f32 0.0, %v549
    %v551 = vpop.f32.mrf.mxu0
    %552 = vmatprep.mubr.f32.mxu0 0.0
    %553 = vmatmul.mubr.f32.gmra.mxu0 %v346
    %v554 = vpop.f32.mrf.mxu0
    %v555 = vadd.f32 0.0, %v554
    %v556 = vpop.f32.mrf.mxu0
    %557 = vdwg.mxu0
    %v566 = vrot.slane %v186, 7
    %vm567 = vcmask 1041409
    %v568 = vsel %vm567, %v566, %v181
    %v569 = vrot.slane %v191, 6
    %vm570 = vcmask 1042434
    %v571 = vsel %vm570, %v569, %v568
    %v572 = vrot.slane %v196, 5
    %vm573 = vcmask 1043459
    %v574 = vsel %vm573, %v572, %v571
    %v575 = vrot.slane %v201, 4
    %vm576 = vcmask 1044484
    %v577 = vsel %vm576, %v575, %v574
    %v578 = vrot.slane %v206, 3
    %vm579 = vcmask 1045509
    %v580 = vsel %vm579, %v578, %v577
    %v581 = vrot.slane %v211, 2
    %vm582 = vcmask 1046534
    %v583 = vsel %vm582, %v581, %v580
    %v584 = vrot.slane %v216, 1
    %vm585 = vcmask 1047559
    %v586 = vsel %vm585, %v584, %v583
    %v588 = vrot.slane %v181, 1
    %v589 = vsel %vm567, %v186, %v588
    %v590 = vrot.slane %v191, 7
    %v591 = vsel %vm570, %v590, %v589
    %v592 = vrot.slane %v196, 6
    %v593 = vsel %vm573, %v592, %v591
    %v594 = vrot.slane %v201, 5
    %v595 = vsel %vm576, %v594, %v593
    %v596 = vrot.slane %v206, 4
    %v597 = vsel %vm579, %v596, %v595
    %v598 = vrot.slane %v211, 3
    %v599 = vsel %vm582, %v598, %v597
    %v600 = vrot.slane %v216, 2
    %v601 = vsel %vm585, %v600, %v599
    %602 = vrot.lane.b32.xlu0 %v601, 8
    %v603 = vpop.permute.xlu0 %602
    %v605 = vrot.slane %v181, 2
    %v606 = vrot.slane %v186, 1
    %v607 = vsel %vm567, %v606, %v605
    %v608 = vsel %vm570, %v191, %v607
    %v609 = vrot.slane %v196, 7
    %v610 = vsel %vm573, %v609, %v608
    %v611 = vrot.slane %v201, 6
    %v612 = vsel %vm576, %v611, %v610
    %v613 = vrot.slane %v206, 5
    %v614 = vsel %vm579, %v613, %v612
    %v615 = vrot.slane %v211, 4
    %v616 = vsel %vm582, %v615, %v614
    %v617 = vrot.slane %v216, 3
    %v618 = vsel %vm585, %v617, %v616
    %619 = vrot.lane.b32.xlu0 %v618, 16
    %v620 = vpop.permute.xlu0 %619
    %v622 = vrot.slane %v181, 3
    %v623 = vrot.slane %v186, 2
    %v624 = vsel %vm567, %v623, %v622
    %v625 = vrot.slane %v191, 1
    %v626 = vsel %vm570, %v625, %v624
    %v627 = vsel %vm573, %v196, %v626
    %v628 = vrot.slane %v201, 7
    %v629 = vsel %vm576, %v628, %v627
    %v630 = vrot.slane %v206, 6
    %v631 = vsel %vm579, %v630, %v629
    %v632 = vrot.slane %v211, 5
    %v633 = vsel %vm582, %v632, %v631
    %v634 = vrot.slane %v216, 4
    %v635 = vsel %vm585, %v634, %v633
    %636 = vrot.lane.b32.xlu0 %v635, 24
    %v637 = vpop.permute.xlu0 %636
    %v639 = vrot.slane %v181, 4
    %v640 = vrot.slane %v186, 3
    %v641 = vsel %vm567, %v640, %v639
    %v642 = vrot.slane %v191, 2
    %v643 = vsel %vm570, %v642, %v641
    %v644 = vrot.slane %v196, 1
    %v645 = vsel %vm573, %v644, %v643
    %v646 = vsel %vm576, %v201, %v645
    %v647 = vrot.slane %v206, 7
    %v648 = vsel %vm579, %v647, %v646
    %v649 = vrot.slane %v211, 6
    %v650 = vsel %vm582, %v649, %v648
    %v651 = vrot.slane %v216, 5
    %v652 = vsel %vm585, %v651, %v650
    %653 = vrot.lane.b32.xlu0 %v652, 32
    %v654 = vpop.permute.xlu0 %653
    %v656 = vrot.slane %v181, 5
    %v657 = vrot.slane %v186, 4
    %v658 = vsel %vm567, %v657, %v656
    %v659 = vrot.slane %v191, 3
    %v660 = vsel %vm570, %v659, %v658
    %v661 = vrot.slane %v196, 2
    %v662 = vsel %vm573, %v661, %v660
    %v663 = vrot.slane %v201, 1
    %v664 = vsel %vm576, %v663, %v662
    %v665 = vsel %vm579, %v206, %v664
    %v666 = vrot.slane %v211, 7
    %v667 = vsel %vm582, %v666, %v665
    %v668 = vrot.slane %v216, 6
    %v669 = vsel %vm585, %v668, %v667
    %670 = vrot.lane.b32.xlu0 %v669, 40
    %v671 = vpop.permute.xlu0 %670
    %v673 = vrot.slane %v181, 6
    %v674 = vrot.slane %v186, 5
    %v675 = vsel %vm567, %v674, %v673
    %v676 = vrot.slane %v191, 4
    %v677 = vsel %vm570, %v676, %v675
    %v678 = vrot.slane %v196, 3
    %v679 = vsel %vm573, %v678, %v677
    %v680 = vrot.slane %v201, 2
    %v681 = vsel %vm576, %v680, %v679
    %v682 = vrot.slane %v206, 1
    %v683 = vsel %vm579, %v682, %v681
    %v684 = vsel %vm582, %v211, %v683
    %v685 = vrot.slane %v216, 7
    %v686 = vsel %vm585, %v685, %v684
    %687 = vrot.lane.b32.xlu0 %v686, 48
    %v688 = vpop.permute.xlu0 %687
    %v690 = vrot.slane %v181, 7
    %v691 = vrot.slane %v186, 6
    %v692 = vsel %vm567, %v691, %v690
    %v693 = vrot.slane %v191, 5
    %v694 = vsel %vm570, %v693, %v692
    %v695 = vrot.slane %v196, 4
    %v696 = vsel %vm573, %v695, %v694
    %v697 = vrot.slane %v201, 3
    %v698 = vsel %vm576, %v697, %v696
    %v699 = vrot.slane %v206, 2
    %v700 = vsel %vm579, %v699, %v698
    %v701 = vrot.slane %v211, 1
    %v702 = vsel %vm582, %v701, %v700
    %v703 = vsel %vm585, %v216, %v702
    %704 = vrot.lane.b32.xlu0 %v703, 56
    %v705 = vpop.permute.xlu0 %704
    %vm707 = vcmask 64512
    %v708 = vsel %vm707, %v586, %v603
    %v709 = vsel %vm89, %v708, %v620
    %vm710 = vcmask 195584
    %v711 = vsel %vm710, %v709, %v637
    %vm712 = vcmask 261120
    %v713 = vsel %vm712, %v711, %v654
    %vm714 = vcmask 326656
    %v715 = vsel %vm714, %v713, %v671
    %vm716 = vcmask 392192
    %v717 = vsel %vm716, %v715, %v688
    %vm718 = vcmask 457728
    %v719 = vsel %vm718, %v717, %v705
    %v721 = vcombine.high %v719, %v719
    %v723 = vunpack.c.l.s4 1966171168
    %v724 = vunpack.c.0.s8 %v723
    %v725 = vlaneseq
    %v726 = vshrl.u32 %v725, 7
    %v727 = vsub.s32 %v724, %v726
    %v728 = vrot.slane %v719, %v727
    %v730 = vunpack.c.l.s4 1966171168
    %v731 = vunpack.c.0.s8 %v730
    %v732 = vlaneseq
    %v733 = vshrl.u32 %v732, 7
    %v734 = vsub.s32 %v731, %v733
    %v735 = vrot.slane %v721, %v734
    %v736 = vcombine.high %v728, %v728
    %v737 = vcombine.high %v735, %v735
    %v739 = vunpack.c.l.s4 1966171168
    %v740 = vunpack.c.0.s8 %v739
    %v741 = vlaneseq
    %v742 = vshrl.u32 %v741, 7
    %v743 = vsub.s32 %v740, %v742
    %v744 = vrot.slane %v728, %v743
    %v746 = vunpack.c.l.s4 1966171168
    %v747 = vunpack.c.0.s8 %v746
    %v748 = vlaneseq
    %v749 = vshrl.u32 %v748, 7
    %v750 = vsub.s32 %v747, %v749
    %v751 = vrot.slane %v735, %v750
    %v753 = vunpack.c.l.s4 1966171168
    %v754 = vunpack.c.0.s8 %v753
    %v755 = vlaneseq
    %v756 = vshrl.u32 %v755, 7
    %v757 = vsub.s32 %v754, %v756
    %v758 = vrot.slane %v736, %v757
    %v760 = vunpack.c.l.s4 1966171168
    %v761 = vunpack.c.0.s8 %v760
    %v762 = vlaneseq
    %v763 = vshrl.u32 %v762, 7
    %v764 = vsub.s32 %v761, %v763
    %v765 = vrot.slane %v737, %v764
    %v766 = vcombine.high %v744, %v744
    %v767 = vcombine.high %v751, %v751
    %v768 = vcombine.high %v758, %v758
    %v769 = vcombine.high %v765, %v765
    %vm778 = vcmask 516096
    %779 = vst.msk [vmem:[#allocation5] sm:$0x1] %vm778, %v744
    %780 = vst.msk [vmem:[#allocation5 + $0x4] sm:$0x1] %vm778, %v758
    %781 = vst.msk [vmem:[#allocation5 + $0x8] sm:$0x1] %vm778, %v766
    %782 = vst.msk [vmem:[#allocation5 + $0xc] sm:$0x1] %vm778, %v768
    %783 = vst.msk [vmem:[#allocation5 + $0x10] sm:$0x1] %vm778, %v751
    %784 = vst.msk [vmem:[#allocation5 + $0x14] sm:$0x1] %vm778, %v765
    %785 = vst.msk [vmem:[#allocation5 + $0x18] sm:$0x1] %vm778, %v767
    %786 = vst.msk [vmem:[#allocation5 + $0x1c] sm:$0x1] %vm778, %v769
    %v795 = vrot.slane %v291, 7
    %v796 = vsel %vm567, %v795, %v286
    %v797 = vrot.slane %v296, 6
    %v798 = vsel %vm570, %v797, %v796
    %v799 = vrot.slane %v301, 5
    %v800 = vsel %vm573, %v799, %v798
    %v801 = vrot.slane %v306, 4
    %v802 = vsel %vm576, %v801, %v800
    %v803 = vrot.slane %v311, 3
    %v804 = vsel %vm579, %v803, %v802
    %v805 = vrot.slane %v316, 2
    %v806 = vsel %vm582, %v805, %v804
    %v807 = vrot.slane %v321, 1
    %v808 = vsel %vm585, %v807, %v806
    %v810 = vrot.slane %v286, 1
    %v811 = vsel %vm567, %v291, %v810
    %v812 = vrot.slane %v296, 7
    %v813 = vsel %vm570, %v812, %v811
    %v814 = vrot.slane %v301, 6
    %v815 = vsel %vm573, %v814, %v813
    %v816 = vrot.slane %v306, 5
    %v817 = vsel %vm576, %v816, %v815
    %v818 = vrot.slane %v311, 4
    %v819 = vsel %vm579, %v818, %v817
    %v820 = vrot.slane %v316, 3
    %v821 = vsel %vm582, %v820, %v819
    %v822 = vrot.slane %v321, 2
    %v823 = vsel %vm585, %v822, %v821
    %824 = vrot.lane.b32.xlu0 %v823, 8
    %v825 = vpop.permute.xlu0 %824
    %v827 = vrot.slane %v286, 2
    %v828 = vrot.slane %v291, 1
    %v829 = vsel %vm567, %v828, %v827
    %v830 = vsel %vm570, %v296, %v829
    %v831 = vrot.slane %v301, 7
    %v832 = vsel %vm573, %v831, %v830
    %v833 = vrot.slane %v306, 6
    %v834 = vsel %vm576, %v833, %v832
    %v835 = vrot.slane %v311, 5
    %v836 = vsel %vm579, %v835, %v834
    %v837 = vrot.slane %v316, 4
    %v838 = vsel %vm582, %v837, %v836
    %v839 = vrot.slane %v321, 3
    %v840 = vsel %vm585, %v839, %v838
    %841 = vrot.lane.b32.xlu0 %v840, 16
    %v842 = vpop.permute.xlu0 %841
    %v844 = vrot.slane %v286, 3
    %v845 = vrot.slane %v291, 2
    %v846 = vsel %vm567, %v845, %v844
    %v847 = vrot.slane %v296, 1
    %v848 = vsel %vm570, %v847, %v846
    %v849 = vsel %vm573, %v301, %v848
    %v850 = vrot.slane %v306, 7
    %v851 = vsel %vm576, %v850, %v849
    %v852 = vrot.slane %v311, 6
    %v853 = vsel %vm579, %v852, %v851
    %v854 = vrot.slane %v316, 5
    %v855 = vsel %vm582, %v854, %v853
    %v856 = vrot.slane %v321, 4
    %v857 = vsel %vm585, %v856, %v855
    %858 = vrot.lane.b32.xlu0 %v857, 24
    %v859 = vpop.permute.xlu0 %858
    %v861 = vrot.slane %v286, 4
    %v862 = vrot.slane %v291, 3
    %v863 = vsel %vm567, %v862, %v861
    %v864 = vrot.slane %v296, 2
    %v865 = vsel %vm570, %v864, %v863
    %v866 = vrot.slane %v301, 1
    %v867 = vsel %vm573, %v866, %v865
    %v868 = vsel %vm576, %v306, %v867
    %v869 = vrot.slane %v311, 7
    %v870 = vsel %vm579, %v869, %v868
    %v871 = vrot.slane %v316, 6
    %v872 = vsel %vm582, %v871, %v870
    %v873 = vrot.slane %v321, 5
    %v874 = vsel %vm585, %v873, %v872
    %875 = vrot.lane.b32.xlu0 %v874, 32
    %v876 = vpop.permute.xlu0 %875
    %v878 = vrot.slane %v286, 5
    %v879 = vrot.slane %v291, 4
    %v880 = vsel %vm567, %v879, %v878
    %v881 = vrot.slane %v296, 3
    %v882 = vsel %vm570, %v881, %v880
    %v883 = vrot.slane %v301, 2
    %v884 = vsel %vm573, %v883, %v882
    %v885 = vrot.slane %v306, 1
    %v886 = vsel %vm576, %v885, %v884
    %v887 = vsel %vm579, %v311, %v886
    %v888 = vrot.slane %v316, 7
    %v889 = vsel %vm582, %v888, %v887
    %v890 = vrot.slane %v321, 6
    %v891 = vsel %vm585, %v890, %v889
    %892 = vrot.lane.b32.xlu0 %v891, 40
    %v893 = vpop.permute.xlu0 %892
    %v895 = vrot.slane %v286, 6
    %v896 = vrot.slane %v291, 5
    %v897 = vsel %vm567, %v896, %v895
    %v898 = vrot.slane %v296, 4
    %v899 = vsel %vm570, %v898, %v897
    %v900 = vrot.slane %v301, 3
    %v901 = vsel %vm573, %v900, %v899
    %v902 = vrot.slane %v306, 2
    %v903 = vsel %vm576, %v902, %v901
    %v904 = vrot.slane %v311, 1
    %v905 = vsel %vm579, %v904, %v903
    %v906 = vsel %vm582, %v316, %v905
    %v907 = vrot.slane %v321, 7
    %v908 = vsel %vm585, %v907, %v906
    %909 = vrot.lane.b32.xlu0 %v908, 48
    %v910 = vpop.permute.xlu0 %909
    %v912 = vrot.slane %v286, 7
    %v913 = vrot.slane %v291, 6
    %v914 = vsel %vm567, %v913, %v912
    %v915 = vrot.slane %v296, 5
    %v916 = vsel %vm570, %v915, %v914
    %v917 = vrot.slane %v301, 4
    %v918 = vsel %vm573, %v917, %v916
    %v919 = vrot.slane %v306, 3
    %v920 = vsel %vm576, %v919, %v918
    %v921 = vrot.slane %v311, 2
    %v922 = vsel %vm579, %v921, %v920
    %v923 = vrot.slane %v316, 1
    %v924 = vsel %vm582, %v923, %v922
    %v925 = vsel %vm585, %v321, %v924
    %926 = vrot.lane.b32.xlu0 %v925, 56
    %v927 = vpop.permute.xlu0 %926
    %v929 = vsel %vm707, %v808, %v825
    %v930 = vsel %vm89, %v929, %v842
    %v931 = vsel %vm710, %v930, %v859
    %v932 = vsel %vm712, %v931, %v876
    %v933 = vsel %vm714, %v932, %v893
    %v934 = vsel %vm716, %v933, %v910
    %v935 = vsel %vm718, %v934, %v927
    %v937 = vcombine.high %v935, %v935
    %v939 = vunpack.c.l.s4 1966171168
    %v940 = vunpack.c.0.s8 %v939
    %v941 = vlaneseq
    %v942 = vshrl.u32 %v941, 7
    %v943 = vsub.s32 %v940, %v942
    %v944 = vrot.slane %v935, %v943
    %v946 = vunpack.c.l.s4 1966171168
    %v947 = vunpack.c.0.s8 %v946
    %v948 = vlaneseq
    %v949 = vshrl.u32 %v948, 7
    %v950 = vsub.s32 %v947, %v949
    %v951 = vrot.slane %v937, %v950
    %v952 = vcombine.high %v944, %v944
    %v953 = vcombine.high %v951, %v951
    %v955 = vunpack.c.l.s4 1966171168
    %v956 = vunpack.c.0.s8 %v955
    %v957 = vlaneseq
    %v958 = vshrl.u32 %v957, 7
    %v959 = vsub.s32 %v956, %v958
    %v960 = vrot.slane %v944, %v959
    %v962 = vunpack.c.l.s4 1966171168
    %v963 = vunpack.c.0.s8 %v962
    %v964 = vlaneseq
    %v965 = vshrl.u32 %v964, 7
    %v966 = vsub.s32 %v963, %v965
    %v967 = vrot.slane %v951, %v966
    %v969 = vunpack.c.l.s4 1966171168
    %v970 = vunpack.c.0.s8 %v969
    %v971 = vlaneseq
    %v972 = vshrl.u32 %v971, 7
    %v973 = vsub.s32 %v970, %v972
    %v974 = vrot.slane %v952, %v973
    %v976 = vunpack.c.l.s4 1966171168
    %v977 = vunpack.c.0.s8 %v976
    %v978 = vlaneseq
    %v979 = vshrl.u32 %v978, 7
    %v980 = vsub.s32 %v977, %v979
    %v981 = vrot.slane %v953, %v980
    %v982 = vcombine.high %v960, %v960
    %v983 = vcombine.high %v967, %v967
    %v984 = vcombine.high %v974, %v974
    %v985 = vcombine.high %v981, %v981
    %994 = vst.msk [vmem:[#allocation5 + $0x1] sm:$0x1] %vm778, %v960
    %995 = vst.msk [vmem:[#allocation5 + $0x5] sm:$0x1] %vm778, %v974
    %996 = vst.msk [vmem:[#allocation5 + $0x9] sm:$0x1] %vm778, %v982
    %997 = vst.msk [vmem:[#allocation5 + $0xd] sm:$0x1] %vm778, %v984
    %998 = vst.msk [vmem:[#allocation5 + $0x11] sm:$0x1] %vm778, %v967
    %999 = vst.msk [vmem:[#allocation5 + $0x15] sm:$0x1] %vm778, %v981
    %1000 = vst.msk [vmem:[#allocation5 + $0x19] sm:$0x1] %vm778, %v983
    %1001 = vst.msk [vmem:[#allocation5 + $0x1d] sm:$0x1] %vm778, %v985
    %v1010 = vrot.slane %v420, 7
    %v1011 = vsel %vm567, %v1010, %v415
    %v1012 = vrot.slane %v425, 6
    %v1013 = vsel %vm570, %v1012, %v1011
    %v1014 = vrot.slane %v430, 5
    %v1015 = vsel %vm573, %v1014, %v1013
    %v1016 = vrot.slane %v435, 4
    %v1017 = vsel %vm576, %v1016, %v1015
    %v1018 = vrot.slane %v440, 3
    %v1019 = vsel %vm579, %v1018, %v1017
    %v1020 = vrot.slane %v445, 2
    %v1021 = vsel %vm582, %v1020, %v1019
    %v1022 = vrot.slane %v450, 1
    %v1023 = vsel %vm585, %v1022, %v1021
    %v1025 = vrot.slane %v415, 1
    %v1026 = vsel %vm567, %v420, %v1025
    %v1027 = vrot.slane %v425, 7
    %v1028 = vsel %vm570, %v1027, %v1026
    %v1029 = vrot.slane %v430, 6
    %v1030 = vsel %vm573, %v1029, %v1028
    %v1031 = vrot.slane %v435, 5
    %v1032 = vsel %vm576, %v1031, %v1030
    %v1033 = vrot.slane %v440, 4
    %v1034 = vsel %vm579, %v1033, %v1032
    %v1035 = vrot.slane %v445, 3
    %v1036 = vsel %vm582, %v1035, %v1034
    %v1037 = vrot.slane %v450, 2
    %v1038 = vsel %vm585, %v1037, %v1036
    %1039 = vrot.lane.b32.xlu0 %v1038, 8
    %v1040 = vpop.permute.xlu0 %1039
    %v1042 = vrot.slane %v415, 2
    %v1043 = vrot.slane %v420, 1
    %v1044 = vsel %vm567, %v1043, %v1042
    %v1045 = vsel %vm570, %v425, %v1044
    %v1046 = vrot.slane %v430, 7
    %v1047 = vsel %vm573, %v1046, %v1045
    %v1048 = vrot.slane %v435, 6
    %v1049 = vsel %vm576, %v1048, %v1047
    %v1050 = vrot.slane %v440, 5
    %v1051 = vsel %vm579, %v1050, %v1049
    %v1052 = vrot.slane %v445, 4
    %v1053 = vsel %vm582, %v1052, %v1051
    %v1054 = vrot.slane %v450, 3
    %v1055 = vsel %vm585, %v1054, %v1053
    %1056 = vrot.lane.b32.xlu0 %v1055, 16
    %v1057 = vpop.permute.xlu0 %1056
    %v1059 = vrot.slane %v415, 3
    %v1060 = vrot.slane %v420, 2
    %v1061 = vsel %vm567, %v1060, %v1059
    %v1062 = vrot.slane %v425, 1
    %v1063 = vsel %vm570, %v1062, %v1061
    %v1064 = vsel %vm573, %v430, %v1063
    %v1065 = vrot.slane %v435, 7
    %v1066 = vsel %vm576, %v1065, %v1064
    %v1067 = vrot.slane %v440, 6
    %v1068 = vsel %vm579, %v1067, %v1066
    %v1069 = vrot.slane %v445, 5
    %v1070 = vsel %vm582, %v1069, %v1068
    %v1071 = vrot.slane %v450, 4
    %v1072 = vsel %vm585, %v1071, %v1070
    %1073 = vrot.lane.b32.xlu0 %v1072, 24
    %v1074 = vpop.permute.xlu0 %1073
    %v1076 = vrot.slane %v415, 4
    %v1077 = vrot.slane %v420, 3
    %v1078 = vsel %vm567, %v1077, %v1076
    %v1079 = vrot.slane %v425, 2
    %v1080 = vsel %vm570, %v1079, %v1078
    %v1081 = vrot.slane %v430, 1
    %v1082 = vsel %vm573, %v1081, %v1080
    %v1083 = vsel %vm576, %v435, %v1082
    %v1084 = vrot.slane %v440, 7
    %v1085 = vsel %vm579, %v1084, %v1083
    %v1086 = vrot.slane %v445, 6
    %v1087 = vsel %vm582, %v1086, %v1085
    %v1088 = vrot.slane %v450, 5
    %v1089 = vsel %vm585, %v1088, %v1087
    %1090 = vrot.lane.b32.xlu0 %v1089, 32
    %v1091 = vpop.permute.xlu0 %1090
    %v1093 = vrot.slane %v415, 5
    %v1094 = vrot.slane %v420, 4
    %v1095 = vsel %vm567, %v1094, %v1093
    %v1096 = vrot.slane %v425, 3
    %v1097 = vsel %vm570, %v1096, %v1095
    %v1098 = vrot.slane %v430, 2
    %v1099 = vsel %vm573, %v1098, %v1097
    %v1100 = vrot.slane %v435, 1
    %v1101 = vsel %vm576, %v1100, %v1099
    %v1102 = vsel %vm579, %v440, %v1101
    %v1103 = vrot.slane %v445, 7
    %v1104 = vsel %vm582, %v1103, %v1102
    %v1105 = vrot.slane %v450, 6
    %v1106 = vsel %vm585, %v1105, %v1104
    %1107 = vrot.lane.b32.xlu0 %v1106, 40
    %v1108 = vpop.permute.xlu0 %1107
    %v1110 = vrot.slane %v415, 6
    %v1111 = vrot.slane %v420, 5
    %v1112 = vsel %vm567, %v1111, %v1110
    %v1113 = vrot.slane %v425, 4
    %v1114 = vsel %vm570, %v1113, %v1112
    %v1115 = vrot.slane %v430, 3
    %v1116 = vsel %vm573, %v1115, %v1114
    %v1117 = vrot.slane %v435, 2
    %v1118 = vsel %vm576, %v1117, %v1116
    %v1119 = vrot.slane %v440, 1
    %v1120 = vsel %vm579, %v1119, %v1118
    %v1121 = vsel %vm582, %v445, %v1120
    %v1122 = vrot.slane %v450, 7
    %v1123 = vsel %vm585, %v1122, %v1121
    %1124 = vrot.lane.b32.xlu0 %v1123, 48
    %v1125 = vpop.permute.xlu0 %1124
    %v1127 = vrot.slane %v415, 7
    %v1128 = vrot.slane %v420, 6
    %v1129 = vsel %vm567, %v1128, %v1127
    %v1130 = vrot.slane %v425, 5
    %v1131 = vsel %vm570, %v1130, %v1129
    %v1132 = vrot.slane %v430, 4
    %v1133 = vsel %vm573, %v1132, %v1131
    %v1134 = vrot.slane %v435, 3
    %v1135 = vsel %vm576, %v1134, %v1133
    %v1136 = vrot.slane %v440, 2
    %v1137 = vsel %vm579, %v1136, %v1135
    %v1138 = vrot.slane %v445, 1
    %v1139 = vsel %vm582, %v1138, %v1137
    %v1140 = vsel %vm585, %v450, %v1139
    %1141 = vrot.lane.b32.xlu0 %v1140, 56
    %v1142 = vpop.permute.xlu0 %1141
    %v1144 = vsel %vm707, %v1023, %v1040
    %v1145 = vsel %vm89, %v1144, %v1057
    %v1146 = vsel %vm710, %v1145, %v1074
    %v1147 = vsel %vm712, %v1146, %v1091
    %v1148 = vsel %vm714, %v1147, %v1108
    %v1149 = vsel %vm716, %v1148, %v1125
    %v1150 = vsel %vm718, %v1149, %v1142
    %v1152 = vcombine.high %v1150, %v1150
    %v1154 = vunpack.c.l.s4 1966171168
    %v1155 = vunpack.c.0.s8 %v1154
    %v1156 = vlaneseq
    %v1157 = vshrl.u32 %v1156, 7
    %v1158 = vsub.s32 %v1155, %v1157
    %v1159 = vrot.slane %v1150, %v1158
    %v1161 = vunpack.c.l.s4 1966171168
    %v1162 = vunpack.c.0.s8 %v1161
    %v1163 = vlaneseq
    %v1164 = vshrl.u32 %v1163, 7
    %v1165 = vsub.s32 %v1162, %v1164
    %v1166 = vrot.slane %v1152, %v1165
    %v1167 = vcombine.high %v1159, %v1159
    %v1168 = vcombine.high %v1166, %v1166
    %v1170 = vunpack.c.l.s4 1966171168
    %v1171 = vunpack.c.0.s8 %v1170
    %v1172 = vlaneseq
    %v1173 = vshrl.u32 %v1172, 7
    %v1174 = vsub.s32 %v1171, %v1173
    %v1175 = vrot.slane %v1159, %v1174
    %v1177 = vunpack.c.l.s4 1966171168
    %v1178 = vunpack.c.0.s8 %v1177
    %v1179 = vlaneseq
    %v1180 = vshrl.u32 %v1179, 7
    %v1181 = vsub.s32 %v1178, %v1180
    %v1182 = vrot.slane %v1166, %v1181
    %v1184 = vunpack.c.l.s4 1966171168
    %v1185 = vunpack.c.0.s8 %v1184
    %v1186 = vlaneseq
    %v1187 = vshrl.u32 %v1186, 7
    %v1188 = vsub.s32 %v1185, %v1187
    %v1189 = vrot.slane %v1167, %v1188
    %v1191 = vunpack.c.l.s4 1966171168
    %v1192 = vunpack.c.0.s8 %v1191
    %v1193 = vlaneseq
    %v1194 = vshrl.u32 %v1193, 7
    %v1195 = vsub.s32 %v1192, %v1194
    %v1196 = vrot.slane %v1168, %v1195
    %v1197 = vcombine.high %v1175, %v1175
    %v1198 = vcombine.high %v1182, %v1182
    %v1199 = vcombine.high %v1189, %v1189
    %v1200 = vcombine.high %v1196, %v1196
    %1209 = vst.msk [vmem:[#allocation5 + $0x2] sm:$0x1] %vm778, %v1175
    %1210 = vst.msk [vmem:[#allocation5 + $0x6] sm:$0x1] %vm778, %v1189
    %1211 = vst.msk [vmem:[#allocation5 + $0xa] sm:$0x1] %vm778, %v1197
    %1212 = vst.msk [vmem:[#allocation5 + $0xe] sm:$0x1] %vm778, %v1199
    %1213 = vst.msk [vmem:[#allocation5 + $0x12] sm:$0x1] %vm778, %v1182
    %1214 = vst.msk [vmem:[#allocation5 + $0x16] sm:$0x1] %vm778, %v1196
    %1215 = vst.msk [vmem:[#allocation5 + $0x1a] sm:$0x1] %vm778, %v1198
    %1216 = vst.msk [vmem:[#allocation5 + $0x1e] sm:$0x1] %vm778, %v1200
    %v1225 = vrot.slane %v525, 7
    %v1226 = vsel %vm567, %v1225, %v520
    %v1227 = vrot.slane %v530, 6
    %v1228 = vsel %vm570, %v1227, %v1226
    %v1229 = vrot.slane %v535, 5
    %v1230 = vsel %vm573, %v1229, %v1228
    %v1231 = vrot.slane %v540, 4
    %v1232 = vsel %vm576, %v1231, %v1230
    %v1233 = vrot.slane %v545, 3
    %v1234 = vsel %vm579, %v1233, %v1232
    %v1235 = vrot.slane %v550, 2
    %v1236 = vsel %vm582, %v1235, %v1234
    %v1237 = vrot.slane %v555, 1
    %v1238 = vsel %vm585, %v1237, %v1236
    %v1240 = vrot.slane %v520, 1
    %v1241 = vsel %vm567, %v525, %v1240
    %v1242 = vrot.slane %v530, 7
    %v1243 = vsel %vm570, %v1242, %v1241
    %v1244 = vrot.slane %v535, 6
    %v1245 = vsel %vm573, %v1244, %v1243
    %v1246 = vrot.slane %v540, 5
    %v1247 = vsel %vm576, %v1246, %v1245
    %v1248 = vrot.slane %v545, 4
    %v1249 = vsel %vm579, %v1248, %v1247
    %v1250 = vrot.slane %v550, 3
    %v1251 = vsel %vm582, %v1250, %v1249
    %v1252 = vrot.slane %v555, 2
    %v1253 = vsel %vm585, %v1252, %v1251
    %1254 = vrot.lane.b32.xlu0 %v1253, 8
    %v1255 = vpop.permute.xlu0 %1254
    %v1257 = vrot.slane %v520, 2
    %v1258 = vrot.slane %v525, 1
    %v1259 = vsel %vm567, %v1258, %v1257
    %v1260 = vsel %vm570, %v530, %v1259
    %v1261 = vrot.slane %v535, 7
    %v1262 = vsel %vm573, %v1261, %v1260
    %v1263 = vrot.slane %v540, 6
    %v1264 = vsel %vm576, %v1263, %v1262
    %v1265 = vrot.slane %v545, 5
    %v1266 = vsel %vm579, %v1265, %v1264
    %v1267 = vrot.slane %v550, 4
    %v1268 = vsel %vm582, %v1267, %v1266
    %v1269 = vrot.slane %v555, 3
    %v1270 = vsel %vm585, %v1269, %v1268
    %1271 = vrot.lane.b32.xlu0 %v1270, 16
    %v1272 = vpop.permute.xlu0 %1271
    %v1274 = vrot.slane %v520, 3
    %v1275 = vrot.slane %v525, 2
    %v1276 = vsel %vm567, %v1275, %v1274
    %v1277 = vrot.slane %v530, 1
    %v1278 = vsel %vm570, %v1277, %v1276
    %v1279 = vsel %vm573, %v535, %v1278
    %v1280 = vrot.slane %v540, 7
    %v1281 = vsel %vm576, %v1280, %v1279
    %v1282 = vrot.slane %v545, 6
    %v1283 = vsel %vm579, %v1282, %v1281
    %v1284 = vrot.slane %v550, 5
    %v1285 = vsel %vm582, %v1284, %v1283
    %v1286 = vrot.slane %v555, 4
    %v1287 = vsel %vm585, %v1286, %v1285
    %1288 = vrot.lane.b32.xlu0 %v1287, 24
    %v1289 = vpop.permute.xlu0 %1288
    %v1291 = vrot.slane %v520, 4
    %v1292 = vrot.slane %v525, 3
    %v1293 = vsel %vm567, %v1292, %v1291
    %v1294 = vrot.slane %v530, 2
    %v1295 = vsel %vm570, %v1294, %v1293
    %v1296 = vrot.slane %v535, 1
    %v1297 = vsel %vm573, %v1296, %v1295
    %v1298 = vsel %vm576, %v540, %v1297
    %v1299 = vrot.slane %v545, 7
    %v1300 = vsel %vm579, %v1299, %v1298
    %v1301 = vrot.slane %v550, 6
    %v1302 = vsel %vm582, %v1301, %v1300
    %v1303 = vrot.slane %v555, 5
    %v1304 = vsel %vm585, %v1303, %v1302
    %1305 = vrot.lane.b32.xlu0 %v1304, 32
    %v1306 = vpop.permute.xlu0 %1305
    %v1308 = vrot.slane %v520, 5
    %v1309 = vrot.slane %v525, 4
    %v1310 = vsel %vm567, %v1309, %v1308
    %v1311 = vrot.slane %v530, 3
    %v1312 = vsel %vm570, %v1311, %v1310
    %v1313 = vrot.slane %v535, 2
    %v1314 = vsel %vm573, %v1313, %v1312
    %v1315 = vrot.slane %v540, 1
    %v1316 = vsel %vm576, %v1315, %v1314
    %v1317 = vsel %vm579, %v545, %v1316
    %v1318 = vrot.slane %v550, 7
    %v1319 = vsel %vm582, %v1318, %v1317
    %v1320 = vrot.slane %v555, 6
    %v1321 = vsel %vm585, %v1320, %v1319
    %1322 = vrot.lane.b32.xlu0 %v1321, 40
    %v1323 = vpop.permute.xlu0 %1322
    %v1325 = vrot.slane %v520, 6
    %v1326 = vrot.slane %v525, 5
    %v1327 = vsel %vm567, %v1326, %v1325
    %v1328 = vrot.slane %v530, 4
    %v1329 = vsel %vm570, %v1328, %v1327
    %v1330 = vrot.slane %v535, 3
    %v1331 = vsel %vm573, %v1330, %v1329
    %v1332 = vrot.slane %v540, 2
    %v1333 = vsel %vm576, %v1332, %v1331
    %v1334 = vrot.slane %v545, 1
    %v1335 = vsel %vm579, %v1334, %v1333
    %v1336 = vsel %vm582, %v550, %v1335
    %v1337 = vrot.slane %v555, 7
    %v1338 = vsel %vm585, %v1337, %v1336
    %1339 = vrot.lane.b32.xlu0 %v1338, 48
    %v1340 = vpop.permute.xlu0 %1339
    %v1342 = vrot.slane %v520, 7
    %v1343 = vrot.slane %v525, 6
    %v1344 = vsel %vm567, %v1343, %v1342
    %v1345 = vrot.slane %v530, 5
    %v1346 = vsel %vm570, %v1345, %v1344
    %v1347 = vrot.slane %v535, 4
    %v1348 = vsel %vm573, %v1347, %v1346
    %v1349 = vrot.slane %v540, 3
    %v1350 = vsel %vm576, %v1349, %v1348
    %v1351 = vrot.slane %v545, 2
    %v1352 = vsel %vm579, %v1351, %v1350
    %v1353 = vrot.slane %v550, 1
    %v1354 = vsel %vm582, %v1353, %v1352
    %v1355 = vsel %vm585, %v555, %v1354
    %1356 = vrot.lane.b32.xlu0 %v1355, 56
    %v1357 = vpop.permute.xlu0 %1356
    %v1359 = vsel %vm707, %v1238, %v1255
    %v1360 = vsel %vm89, %v1359, %v1272
    %v1361 = vsel %vm710, %v1360, %v1289
    %v1362 = vsel %vm712, %v1361, %v1306
    %v1363 = vsel %vm714, %v1362, %v1323
    %v1364 = vsel %vm716, %v1363, %v1340
    %v1365 = vsel %vm718, %v1364, %v1357
    %v1367 = vcombine.high %v1365, %v1365
    %v1369 = vunpack.c.l.s4 1966171168
    %v1370 = vunpack.c.0.s8 %v1369
    %v1371 = vlaneseq
    %v1372 = vshrl.u32 %v1371, 7
    %v1373 = vsub.s32 %v1370, %v1372
    %v1374 = vrot.slane %v1365, %v1373
    %v1376 = vunpack.c.l.s4 1966171168
    %v1377 = vunpack.c.0.s8 %v1376
    %v1378 = vlaneseq
    %v1379 = vshrl.u32 %v1378, 7
    %v1380 = vsub.s32 %v1377, %v1379
    %v1381 = vrot.slane %v1367, %v1380
    %v1382 = vcombine.high %v1374, %v1374
    %v1383 = vcombine.high %v1381, %v1381
    %v1385 = vunpack.c.l.s4 1966171168
    %v1386 = vunpack.c.0.s8 %v1385
    %v1387 = vlaneseq
    %v1388 = vshrl.u32 %v1387, 7
    %v1389 = vsub.s32 %v1386, %v1388
    %v1390 = vrot.slane %v1374, %v1389
    %v1392 = vunpack.c.l.s4 1966171168
    %v1393 = vunpack.c.0.s8 %v1392
    %v1394 = vlaneseq
    %v1395 = vshrl.u32 %v1394, 7
    %v1396 = vsub.s32 %v1393, %v1395
    %v1397 = vrot.slane %v1381, %v1396
    %v1399 = vunpack.c.l.s4 1966171168
    %v1400 = vunpack.c.0.s8 %v1399
    %v1401 = vlaneseq
    %v1402 = vshrl.u32 %v1401, 7
    %v1403 = vsub.s32 %v1400, %v1402
    %v1404 = vrot.slane %v1382, %v1403
    %v1406 = vunpack.c.l.s4 1966171168
    %v1407 = vunpack.c.0.s8 %v1406
    %v1408 = vlaneseq
    %v1409 = vshrl.u32 %v1408, 7
    %v1410 = vsub.s32 %v1407, %v1409
    %v1411 = vrot.slane %v1383, %v1410
    %v1412 = vcombine.high %v1390, %v1390
    %v1413 = vcombine.high %v1397, %v1397
    %v1414 = vcombine.high %v1404, %v1404
    %v1415 = vcombine.high %v1411, %v1411
    %1424 = vst.msk [vmem:[#allocation5 + $0x3] sm:$0x1] %vm778, %v1390
    %1425 = vst.msk [vmem:[#allocation5 + $0x7] sm:$0x1] %vm778, %v1404
    %1426 = vst.msk [vmem:[#allocation5 + $0xb] sm:$0x1] %vm778, %v1412
    %1427 = vst.msk [vmem:[#allocation5 + $0xf] sm:$0x1] %vm778, %v1414
    %1428 = vst.msk [vmem:[#allocation5 + $0x13] sm:$0x1] %vm778, %v1397
    %1429 = vst.msk [vmem:[#allocation5 + $0x17] sm:$0x1] %vm778, %v1411
    %1430 = vst.msk [vmem:[#allocation5 + $0x1b] sm:$0x1] %vm778, %v1413
    %1431 = vst.msk [vmem:[#allocation5 + $0x1f] sm:$0x1] %vm778, %v1415
    // Predicated region
    $region18: #{tpu_custom_call.1} parent=1 // pred_check
      _
    $region19: #{tpu_custom_call.1} parent=1 // pred_check_branch
      %1433 = sbr.rel (0) target = $region21
    $region20: #{tpu_custom_call.1} parent=1 // pred_region
      %s1435 = ssub.s32 512, 512
      %1436 = vsyncadd [#allocation4], %s1435
      %s1437 = sshll.u32 [#allocation5], 4
      %s1438 = int_to_ptr.vmem [resolvable:$true] %s1437
      %1443 = dma.vmem_to_hbm [thread:$0]  %s1438, 512, %s3, [#allocation4], 64, 64, 4
    $region21: #{tpu_custom_call.1} parent=1 // pred_fallthru
      _
    // Predicated region
    $region22: #{tpu_custom_call.1} parent=1 // pred_check
      _
    $region23: #{tpu_custom_call.1} parent=1 // pred_check_branch
      %1445 = sbr.rel (0) target = $region25
    $region24: #{tpu_custom_call.1} parent=1 // pred_region
      %1446 = dma.done [#allocation4], 512
    $region25: #{tpu_custom_call.1} parent=1 // pred_fallthru
      _
    %1447 = vsyncpa [#allocation3], 1
    %1448 = vsyncpa [#allocation4], 1

</llo_original>
